<compile_context>
chip_gen: v5e
topology: v5e:2x2
jax: 0.10.0
libtpu: 0.0.40
codegen_flags: <defaults>
</compile_context>

<pallas_src>
import jax
import jax.numpy as jnp
from jax.experimental import pallas as pl
from jax.experimental.pallas import tpu as pltpu


def _round_up(n: int, m: int) -> int:
    return ((n + m - 1) // m) * m


def _sublanes(dtype) -> int:
    """Sublane packing of a (sublane, 128) vreg tile: 8 f32, 16 bf16, 32 int8/fp8."""
    return max(8, 32 // jnp.dtype(dtype).itemsize)


def autoencoder_kernel(x_ref, we_ref, be_ref, wd_ref, bd_ref, *out_refs):
    """One batch tile: latent = relu(x @ We + be); recon = latent @ Wd + bd."""
    if len(out_refs) == 2:
        latent_ref, recon_ref = out_refs
    else:
        latent_ref = None
        (recon_ref,) = out_refs

    x = x_ref[...]
    if x.dtype != we_ref.dtype:     # normally a no-op: x already arrives in param dtype
        x = x.astype(we_ref.dtype)

    # Encoder matmul on the MXU with f32 accumulation; bias + ReLU in f32 on the VPU.
    enc = jnp.dot(x, we_ref[...], preferred_element_type=jnp.float32)
    latent_f32 = jnp.maximum(enc + be_ref[...].astype(jnp.float32), 0.0)

    # Cast the latent once and reuse it for both the store and the decoder matmul.
    latent_lhs = latent_f32.astype(wd_ref.dtype)
    if latent_ref is not None:
        if latent_ref.dtype == wd_ref.dtype:
            latent_ref[...] = latent_lhs
        else:
            latent_ref[...] = latent_f32.astype(latent_ref.dtype)

    rec = jnp.dot(latent_lhs, wd_ref[...], preferred_element_type=jnp.float32)
    rec = rec + bd_ref[...].astype(jnp.float32)
    recon_ref[...] = rec.astype(recon_ref.dtype)


def init_params(key, input_dim, latent_dim, dtype=jnp.float32):
    """PyTorch-layout params, mimicking nn.Linear's U(-1/sqrt(fan_in), 1/sqrt(fan_in))."""
    k1, k2, k3, k4 = jax.random.split(key, 4)
    bound_e = 1.0 / (input_dim ** 0.5)
    bound_d = 1.0 / (latent_dim ** 0.5)
    w_enc = jax.random.uniform(k1, (latent_dim, input_dim), dtype, -bound_e, bound_e)
    b_enc = jax.random.uniform(k2, (latent_dim,), dtype, -bound_e, bound_e)
    w_dec = jax.random.uniform(k3, (input_dim, latent_dim), dtype, -bound_d, bound_d)
    b_dec = jax.random.uniform(k4, (input_dim,), dtype, -bound_d, bound_d)
    return w_enc, b_enc, w_dec, b_dec


def prepare_params(w_enc, b_enc, w_dec, b_dec, *, lane=128, param_dtype=None):
    """One-time (init-time) conversion from PyTorch layout to the kernel layout.

    * Weights -> (in_features, out_features); biases -> (1, out_features).
    * Feature dims zero-padded to a multiple of `lane` so stores are lane-dense
      (padding is a mathematical no-op: padded features stay exactly zero).
    * param_dtype=jnp.bfloat16 is recommended on v5e/v6e/v7x (HBM-bound kernel);
      the kernel still accumulates in f32.
    * lane=256 only becomes useful if the kernel ever turns compute-bound on the
      256-wide v6e/v7x MXU; at HBM-bound sizes 128 is fine.
    """
    latent_dim, input_dim = w_enc.shape
    din_p = _round_up(input_dim, lane)
    dlat_p = _round_up(latent_dim, lane)

    we = jnp.zeros((din_p, dlat_p), w_enc.dtype).at[:input_dim, :latent_dim].set(w_enc.T)
    wd = jnp.zeros((dlat_p, din_p), w_dec.dtype).at[:latent_dim, :input_dim].set(w_dec.T)
    be = jnp.zeros((1, dlat_p), b_enc.dtype).at[0, :latent_dim].set(b_enc)
    bd = jnp.zeros((1, din_p), b_dec.dtype).at[0, :input_dim].set(b_dec)
    if param_dtype is not None:
        we, wd, be, bd = (a.astype(param_dtype) for a in (we, wd, be, bd))
    return {"we": we, "be": be, "wd": wd, "bd": bd,
            "input_dim": input_dim, "latent_dim": latent_dim}


def _choose_batch_tile(batch, sublane, tm_max, min_grid=2):
    """Pick (tile_rows, padded_batch).

    Tile is a sublane multiple, prefers dividing the (sublane-rounded) batch so no
    batch padding copy of x is needed, and (when the batch is large enough) leaves
    >= min_grid grid steps so both v7x TensorCores get work.
    """
    bp = _round_up(batch, sublane)
    cap = min(tm_max, bp)
    if bp >= min_grid * sublane:
        cap = min(cap, bp // min_grid)
    cap = max(sublane, (cap // sublane) * sublane)
    for t in range(cap, sublane - 1, -sublane):
        if bp % t == 0:
            return t, bp
    return cap, _round_up(bp, cap)   # unreachable: sublane always divides bp


def simple_autoencoder_forward(x, params, *, tm_max=1024, min_grid=2,
                               return_latent=True, single_buffer_params=True):
    """Forward pass with PyTorch semantics.

    Returns (latent, reconstructed) if return_latent else reconstructed only
    (skipping the latent HBM store on this bandwidth-bound kernel).
    Output dtype follows x.dtype (pass bf16 x with bf16 params for the low-byte path).
    """
    we, be, wd, bd = params["we"], params["be"], params["wd"], params["bd"]
    input_dim, latent_dim = params["input_dim"], params["latent_dim"]
    din_p, dlat_p = we.shape
    B, d_in = x.shape
    assert d_in == input_dim, "x feature dim does not match encoder input_dim"
    out_dtype = x.dtype

    # Feature padding only if input_dim is not lane-aligned (no-op when aligned).
    # TODO(synk): if x is reused across many calls with unaligned input_dim, pad it
    # once upstream instead of per call (this kernel is HBM-bound).
    if din_p != d_in:
        x = jnp.pad(x, ((0, 0), (0, din_p - d_in)))

    # Batch tiling (dtype-packed sublanes, prefer tm | B so no batch-pad copy).
    sub = _sublanes(x.dtype)
    tm, bp = _choose_batch_tile(B, sub, tm_max, min_grid)
    if bp != B:
        x = jnp.pad(x, ((0, bp - B), (0, 0)))
    grid = (bp // tm,)

    # VMEM budget derived from actual buffer sizes (resident params + double-buffered
    # I/O tiles), instead of a fixed limit.
    p_item = jnp.dtype(we.dtype).itemsize
    x_item = jnp.dtype(x.dtype).itemsize
    o_item = jnp.dtype(out_dtype).itemsize
    param_bytes = int(we.size + wd.size + be.size + bd.size) * p_item
    io_tile_bytes = tm * din_p * x_item + tm * din_p * o_item
    if return_latent:
        io_tile_bytes += tm * dlat_p * o_item
    resident_bytes = (1 if single_buffer_params else 2) * param_bytes
    needed = resident_bytes + 2 * io_tile_bytes
    vmem_limit = min(max(int(needed * 1.5) + (4 << 20), 32 << 20), 100 << 20)
    # TODO(synk): if resident_bytes approaches ~40-50 MiB (v7x has 64 MiB VMEM/TC),
    # switch params to bf16 and/or tile the K dimension instead of keeping them resident.

    # Never-changing param blocks: single-buffered; x/outputs stay double-buffered.
    param_mode = pl.Buffered(1) if single_buffer_params else None
    in_specs = [
        pl.BlockSpec((tm, din_p), lambda i: (i, 0)),                                  # x
        pl.BlockSpec((din_p, dlat_p), lambda i: (0, 0), pipeline_mode=param_mode),    # We
        pl.BlockSpec((1, dlat_p), lambda i: (0, 0), pipeline_mode=param_mode),        # be
        pl.BlockSpec((dlat_p, din_p), lambda i: (0, 0), pipeline_mode=param_mode),    # Wd
        pl.BlockSpec((1, din_p), lambda i: (0, 0), pipeline_mode=param_mode),         # bd
    ]

    recon_shape = jax.ShapeDtypeStruct((bp, din_p), out_dtype)
    recon_spec = pl.BlockSpec((tm, din_p), lambda i: (i, 0))
    if return_latent:
        out_shape = (jax.ShapeDtypeStruct((bp, dlat_p), out_dtype), recon_shape)
        out_specs = (pl.BlockSpec((tm, dlat_p), lambda i: (i, 0)), recon_spec)
    else:
        out_shape = recon_shape
        out_specs = recon_spec

    flops = 4 * bp * din_p * dlat_p
    bytes_accessed = int(bp * din_p * x_item + param_bytes + bp * din_p * o_item
                         + (bp * dlat_p * o_item if return_latent else 0))

    outs = pl.pallas_call(
        autoencoder_kernel,
        out_shape=out_shape,
        grid=grid,
        in_specs=in_specs,
        out_specs=out_specs,
        compiler_params=pltpu.CompilerParams(
            dimension_semantics=("parallel",),       # megacore-shard batch tiles on v7x
            vmem_limit_bytes=vmem_limit,
        ),
        cost_estimate=pl.CostEstimate(
            flops=flops, transcendentals=0, bytes_accessed=bytes_accessed),
    )(x, we, be, wd, bd)

    if return_latent:
        latent, recon = outs
        if bp != B or dlat_p != latent_dim:
            latent = latent[:B, :latent_dim]
        if bp != B or din_p != input_dim:
            recon = recon[:B, :input_dim]
        return latent, recon
    recon = outs
    if bp != B or din_p != input_dim:
        recon = recon[:B, :input_dim]
    return recon


if __name__ == "__main__":
    key = jax.random.PRNGKey(0)
    batch, input_dim, latent_dim = 512, 256, 128

    k_x, k_p = jax.random.split(key)
    x = jax.random.normal(k_x, (batch, input_dim), jnp.float32)
    w_enc, b_enc, w_dec, b_dec = init_params(k_p, input_dim, latent_dim)

    def run(xx, params, **kw):
        """Jit + call the forward; fall back to default double-buffered params
        if this jax build rejects pipeline_mode=pl.Buffered(1)."""
        try:
            out = jax.jit(lambda a: simple_autoencoder_forward(a, params, **kw))(xx)
        except Exception:
            kw2 = dict(kw, single_buffer_params=False)
            out = jax.jit(lambda a: simple_autoencoder_forward(a, params, **kw2))(xx)
        return jax.block_until_ready(out)

    # ---- f32 path (exact PyTorch semantics) ----
    params_f32 = prepare_params(w_enc, b_enc, w_dec, b_dec)
    latent, recon = run(x, params_f32)
    lat_ref = jnp.maximum(x @ w_enc.T + b_enc, 0.0)
    rec_ref = lat_ref @ w_dec.T + b_dec
    assert latent.shape == (batch, latent_dim) and recon.shape == (batch, input_dim)
    assert jnp.allclose(latent, lat_ref, atol=1e-4, rtol=1e-4), "latent mismatch"
    assert jnp.allclose(recon, rec_ref, atol=1e-4, rtol=1e-4), "reconstruction mismatch"

    # ---- recon-only path (skips the latent HBM store) ----
    recon_only = run(x, params_f32, return_latent=False)
    assert jnp.allclose(recon_only, rec_ref, atol=1e-4, rtol=1e-4), "recon-only mismatch"

    # ---- bf16 byte-reduction path (bf16 x/params/outputs, f32 accumulation) ----
    params_bf16 = prepare_params(w_enc, b_enc, w_dec, b_dec, param_dtype=jnp.bfloat16)
    x_bf16 = x.astype(jnp.bfloat16)
    lat_b, rec_b = run(x_bf16, params_bf16)
    xe = x_bf16.astype(jnp.float32)
    we_f = w_enc.astype(jnp.bfloat16).astype(jnp.float32)
    be_f = b_enc.astype(jnp.bfloat16).astype(jnp.float32)
    wd_f = w_dec.astype(jnp.bfloat16).astype(jnp.float32)
    bd_f = b_dec.astype(jnp.bfloat16).astype(jnp.float32)
    lat_bref = jnp.maximum(xe @ we_f.T + be_f, 0.0)
    rec_bref = lat_bref.astype(jnp.bfloat16).astype(jnp.float32) @ wd_f.T + bd_f
    assert lat_b.dtype == jnp.bfloat16 and rec_b.dtype == jnp.bfloat16
    assert jnp.allclose(lat_b.astype(jnp.float32), lat_bref, atol=3e-2, rtol=3e-2)
    assert jnp.allclose(rec_b.astype(jnp.float32), rec_bref, atol=3e-2, rtol=3e-2)

    # ---- unaligned dims (wrapper pads features/batch; math unchanged) ----
    b2, d2, l2 = 100, 200, 72
    x2 = jax.random.normal(jax.random.PRNGKey(1), (b2, d2), jnp.float32)
    p2 = init_params(jax.random.PRNGKey(2), d2, l2)
    params2 = prepare_params(*p2)
    lat2, rec2 = run(x2, params2)
    lat2_ref = jnp.maximum(x2 @ p2[0].T + p2[1], 0.0)
    rec2_ref = lat2_ref @ p2[2].T + p2[3]
    assert lat2.shape == (b2, l2) and rec2.shape == (b2, d2)
    assert jnp.allclose(lat2, lat2_ref, atol=1e-4, rtol=1e-4), "unaligned latent mismatch"
    assert jnp.allclose(rec2, rec2_ref, atol=1e-4, rtol=1e-4), "unaligned recon mismatch"

    print("KERNEL_OK")
</pallas_src>

<mosaic_0001>
module attributes {stable_mosaic.version = 11 : i64} {
  func.func @autoencoder_kernel(%arg0: i32, %arg1: memref<256x256xf32, #tpu.memory_space<vmem>>, %arg2: memref<256x128xf32, #tpu.memory_space<vmem>>, %arg3: memref<1x128xf32, #tpu.memory_space<vmem>>, %arg4: memref<128x256xf32, #tpu.memory_space<vmem>>, %arg5: memref<1x256xf32, #tpu.memory_space<vmem>>, %arg6: memref<256x128xf32, #tpu.memory_space<vmem>>, %arg7: memref<256x256xf32, #tpu.memory_space<vmem>>) attributes {dimension_semantics = [#tpu.dimension_semantics<parallel>], iteration_bounds = array<i64: 2>, scalar_prefetch = 0 : i64, scratch_operands = 0 : i64, tpu.core_type = #tpu.core_type<tc>, window_params = [{transform_indices = @transform_0, window_bounds = array<i64: 256, 256>}, {pipeline_mode = #tpu.pipeline_mode<synchronous>, transform_indices = @transform_1, window_bounds = array<i64: 256, 128>}, {pipeline_mode = #tpu.pipeline_mode<synchronous>, transform_indices = @transform_2, window_bounds = array<i64: 1, 128>}, {pipeline_mode = #tpu.pipeline_mode<synchronous>, transform_indices = @transform_3, window_bounds = array<i64: 128, 256>}, {pipeline_mode = #tpu.pipeline_mode<synchronous>, transform_indices = @transform_4, window_bounds = array<i64: 1, 256>}, {transform_indices = @transform_5, window_bounds = array<i64: 256, 128>}, {transform_indices = @transform_6, window_bounds = array<i64: 256, 256>}]} {
    %c0 = arith.constant 0 : index
    %c0_0 = arith.constant 0 : index
    %0 = vector.load %arg1[%c0, %c0_0] : memref<256x256xf32, #tpu.memory_space<vmem>>, vector<256x256xf32>
    %c0_1 = arith.constant 0 : index
    %c0_2 = arith.constant 0 : index
    %1 = vector.load %arg2[%c0_1, %c0_2] : memref<256x128xf32, #tpu.memory_space<vmem>>, vector<256x128xf32>
    %cst = arith.constant dense<0.000000e+00> : vector<256x128xf32>
    %2 = tpu.matmul %0, %1, %cst {dimension_numbers = #tpu.dot_dimension_numbers<[1], [0], [0], [1], [0, 0, 1, 1], [], []>} : vector<256x256xf32>, vector<256x128xf32>, vector<256x128xf32> -> vector<256x128xf32>
    %c0_3 = arith.constant 0 : index
    %c0_4 = arith.constant 0 : index
    %3 = vector.load %arg3[%c0_3, %c0_4] : memref<1x128xf32, #tpu.memory_space<vmem>>, vector<1x128xf32>
    %4 = vector.broadcast %3 : vector<1x128xf32> to vector<256x128xf32>
    %5 = arith.addf %2, %4 : vector<256x128xf32>
    %cst_5 = arith.constant 0.000000e+00 : f32
    %6 = vector.broadcast %cst_5 : f32 to vector<256x128xf32>
    %7 = arith.maximumf %5, %6 : vector<256x128xf32>
    %c0_6 = arith.constant 0 : index
    %c0_7 = arith.constant 0 : index
    %8 = vector.load %arg6[%c0_6, %c0_7] : memref<256x128xf32, #tpu.memory_space<vmem>>, vector<256x128xf32>
    tpu.vector_store %arg6[%c0_6, %c0_7], %7 {strides = array<i32>} : memref<256x128xf32, #tpu.memory_space<vmem>>, vector<256x128xf32>,
    %c0_8 = arith.constant 0 : index
    %c0_9 = arith.constant 0 : index
    %9 = vector.load %arg4[%c0_8, %c0_9] : memref<128x256xf32, #tpu.memory_space<vmem>>, vector<128x256xf32>
    %cst_10 = arith.constant dense<0.000000e+00> : vector<256x256xf32>
    %10 = tpu.matmul %7, %9, %cst_10 {dimension_numbers = #tpu.dot_dimension_numbers<[1], [0], [0], [1], [0, 0, 1, 1], [], []>} : vector<256x128xf32>, vector<128x256xf32>, vector<256x256xf32> -> vector<256x256xf32>
    %c0_11 = arith.constant 0 : index
    %c0_12 = arith.constant 0 : index
    %11 = vector.load %arg5[%c0_11, %c0_12] : memref<1x256xf32, #tpu.memory_space<vmem>>, vector<1x256xf32>
    %12 = vector.broadcast %11 : vector<1x256xf32> to vector<256x256xf32>
    %13 = arith.addf %10, %12 : vector<256x256xf32>
    %c0_13 = arith.constant 0 : index
    %c0_14 = arith.constant 0 : index
    %14 = vector.load %arg7[%c0_13, %c0_14] : memref<256x256xf32, #tpu.memory_space<vmem>>, vector<256x256xf32>
    tpu.vector_store %arg7[%c0_13, %c0_14], %13 {strides = array<i32>} : memref<256x256xf32, #tpu.memory_space<vmem>>, vector<256x256xf32>,
    return
  }
  func.func @transform_0(%arg0: i32) -> (i32, i32) {
    %c0_i32 = arith.constant 0 : i32
    %c0_i32_0 = arith.constant 0 : i32
    return %arg0, %c0_i32 : i32, i32
  }
  func.func @transform_1(%arg0: i32) -> (i32, i32) {
    %c0_i32 = arith.constant 0 : i32
    %c0_i32_0 = arith.constant 0 : i32
    %c0_i32_1 = arith.constant 0 : i32
    return %c0_i32, %c0_i32_0 : i32, i32
  }
  func.func @transform_2(%arg0: i32) -> (i32, i32) {
    %c0_i32 = arith.constant 0 : i32
    %c0_i32_0 = arith.constant 0 : i32
    %c0_i32_1 = arith.constant 0 : i32
    return %c0_i32, %c0_i32_0 : i32, i32
  }
  func.func @transform_3(%arg0: i32) -> (i32, i32) {
    %c0_i32 = arith.constant 0 : i32
    %c0_i32_0 = arith.constant 0 : i32
    %c0_i32_1 = arith.constant 0 : i32
    return %c0_i32, %c0_i32_0 : i32, i32
  }
  func.func @transform_4(%arg0: i32) -> (i32, i32) {
    %c0_i32 = arith.constant 0 : i32
    %c0_i32_0 = arith.constant 0 : i32
    %c0_i32_1 = arith.constant 0 : i32
    return %c0_i32, %c0_i32_0 : i32, i32
  }
  func.func @transform_5(%arg0: i32) -> (i32, i32) {
    %c0_i32 = arith.constant 0 : i32
    %c0_i32_0 = arith.constant 0 : i32
    return %arg0, %c0_i32 : i32, i32
  }
  func.func @transform_6(%arg0: i32) -> (i32, i32) {
    %c0_i32 = arith.constant 0 : i32
    %c0_i32_0 = arith.constant 0 : i32
    return %arg0, %c0_i32 : i32, i32
  }
}

module attributes {stable_mosaic.version = 11 : i64} {
  func.func @autoencoder_kernel(%arg0: i32, %arg1: memref<256x256xf32, #tpu.memory_space<vmem>>, %arg2: memref<256x128xf32, #tpu.memory_space<vmem>>, %arg3: memref<1x128xf32, #tpu.memory_space<vmem>>, %arg4: memref<128x256xf32, #tpu.memory_space<vmem>>, %arg5: memref<1x256xf32, #tpu.memory_space<vmem>>, %arg6: memref<256x128xf32, #tpu.memory_space<vmem>>, %arg7: memref<256x256xf32, #tpu.memory_space<vmem>>) attributes {dimension_semantics = [#tpu.dimension_semantics<parallel>], iteration_bounds = array<i64: 2>, scalar_prefetch = 0 : i64, scratch_operands = 0 : i64, tpu.core_type = #tpu.core_type<tc>, window_params = [{transform_indices = @transform_0, window_bounds = array<i64: 256, 256>}, {pipeline_mode = #tpu.pipeline_mode<synchronous>, transform_indices = @transform_1, window_bounds = array<i64: 256, 128>}, {pipeline_mode = #tpu.pipeline_mode<synchronous>, transform_indices = @transform_2, window_bounds = array<i64: 1, 128>}, {pipeline_mode = #tpu.pipeline_mode<synchronous>, transform_indices = @transform_3, window_bounds = array<i64: 128, 256>}, {pipeline_mode = #tpu.pipeline_mode<synchronous>, transform_indices = @transform_4, window_bounds = array<i64: 1, 256>}, {transform_indices = @transform_5, window_bounds = array<i64: 256, 128>}, {transform_indices = @transform_6, window_bounds = array<i64: 256, 256>}]} {
    %c0 = arith.constant 0 : index
    %c0_0 = arith.constant 0 : index
    %0 = vector.load %arg1[%c0, %c0_0] : memref<256x256xf32, #tpu.memory_space<vmem>>, vector<256x256xf32>
    %c0_1 = arith.constant 0 : index
    %c0_2 = arith.constant 0 : index
    %1 = vector.load %arg2[%c0_1, %c0_2] : memref<256x128xf32, #tpu.memory_space<vmem>>, vector<256x128xf32>
    %cst = arith.constant dense<0.000000e+00> : vector<256x128xf32>
    %2 = tpu.matmul %0, %1, %cst {dimension_numbers = #tpu.dot_dimension_numbers<[1], [0], [0], [1], [0, 0, 1, 1], [], []>} : vector<256x256xf32>, vector<256x128xf32>, vector<256x128xf32> -> vector<256x128xf32>
    %c0_3 = arith.constant 0 : index
    %c0_4 = arith.constant 0 : index
    %3 = vector.load %arg3[%c0_3, %c0_4] : memref<1x128xf32, #tpu.memory_space<vmem>>, vector<1x128xf32>
    %4 = vector.broadcast %3 : vector<1x128xf32> to vector<256x128xf32>
    %5 = arith.addf %2, %4 : vector<256x128xf32>
    %cst_5 = arith.constant 0.000000e+00 : f32
    %6 = vector.broadcast %cst_5 : f32 to vector<256x128xf32>
    %7 = arith.maximumf %5, %6 : vector<256x128xf32>
    %c0_6 = arith.constant 0 : index
    %c0_7 = arith.constant 0 : index
    %8 = vector.load %arg6[%c0_6, %c0_7] : memref<256x128xf32, #tpu.memory_space<vmem>>, vector<256x128xf32>
    tpu.vector_store %arg6[%c0_6, %c0_7], %7 {strides = array<i32>} : memref<256x128xf32, #tpu.memory_space<vmem>>, vector<256x128xf32>,
    %c0_8 = arith.constant 0 : index
    %c0_9 = arith.constant 0 : index
    %9 = vector.load %arg4[%c0_8, %c0_9] : memref<128x256xf32, #tpu.memory_space<vmem>>, vector<128x256xf32>
    %cst_10 = arith.constant dense<0.000000e+00> : vector<256x256xf32>
    %10 = tpu.matmul %7, %9, %cst_10 {dimension_numbers = #tpu.dot_dimension_numbers<[1], [0], [0], [1], [0, 0, 1, 1], [], []>} : vector<256x128xf32>, vector<128x256xf32>, vector<256x256xf32> -> vector<256x256xf32>
    %c0_11 = arith.constant 0 : index
    %c0_12 = arith.constant 0 : index
    %11 = vector.load %arg5[%c0_11, %c0_12] : memref<1x256xf32, #tpu.memory_space<vmem>>, vector<1x256xf32>
    %12 = vector.broadcast %11 : vector<1x256xf32> to vector<256x256xf32>
    %13 = arith.addf %10, %12 : vector<256x256xf32>
    %c0_13 = arith.constant 0 : index
    %c0_14 = arith.constant 0 : index
    %14 = vector.load %arg7[%c0_13, %c0_14] : memref<256x256xf32, #tpu.memory_space<vmem>>, vector<256x256xf32>
    tpu.vector_store %arg7[%c0_13, %c0_14], %13 {strides = array<i32>} : memref<256x256xf32, #tpu.memory_space<vmem>>, vector<256x256xf32>,
    return
  }
  func.func @transform_0(%arg0: i32) -> (i32, i32) {
    %c0_i32 = arith.constant 0 : i32
    %c0_i32_0 = arith.constant 0 : i32
    return %arg0, %c0_i32 : i32, i32
  }
  func.func @transform_1(%arg0: i32) -> (i32, i32) {
    %c0_i32 = arith.constant 0 : i32
    %c0_i32_0 = arith.constant 0 : i32
    %c0_i32_1 = arith.constant 0 : i32
    return %c0_i32, %c0_i32_0 : i32, i32
  }
  func.func @transform_2(%arg0: i32) -> (i32, i32) {
    %c0_i32 = arith.constant 0 : i32
    %c0_i32_0 = arith.constant 0 : i32
    %c0_i32_1 = arith.constant 0 : i32
    return %c0_i32, %c0_i32_0 : i32, i32
  }
  func.func @transform_3(%arg0: i32) -> (i32, i32) {
    %c0_i32 = arith.constant 0 : i32
    %c0_i32_0 = arith.constant 0 : i32
    %c0_i32_1 = arith.constant 0 : i32
    return %c0_i32, %c0_i32_0 : i32, i32
  }
  func.func @transform_4(%arg0: i32) -> (i32, i32) {
    %c0_i32 = arith.constant 0 : i32
    %c0_i32_0 = arith.constant 0 : i32
    %c0_i32_1 = arith.constant 0 : i32
    return %c0_i32, %c0_i32_0 : i32, i32
  }
  func.func @transform_5(%arg0: i32) -> (i32, i32) {
    %c0_i32 = arith.constant 0 : i32
    %c0_i32_0 = arith.constant 0 : i32
    return %arg0, %c0_i32 : i32, i32
  }
  func.func @transform_6(%arg0: i32) -> (i32, i32) {
    %c0_i32 = arith.constant 0 : i32
    %c0_i32_0 = arith.constant 0 : i32
    return %arg0, %c0_i32 : i32, i32
  }
}

</mosaic_0001>

<llo_original>
// kernel: _lambda_.1
$region0: #{_lambda_.1}
  #allocation0 [shape = 'u32[]', space=smem, size = 0x4, offset = 0x4, fixed_abs, tag = 'smem constant byte address 0x4 - core index']
  #allocation1 [shape = 'u32[72,128]{1,0:T(1,128)}', space=vmem, size = 0x9000, scoped, tag = 'internal scratch']
  %s0 = inlined_call_operand.hbm [shape: f32[512,256], index: 0, kind: input, shape index: {}]
  %s1 = inlined_call_operand.hbm [shape: f32[256,128], index: 1, kind: input, shape index: {}]
  %s2 = inlined_call_operand.vmem [shape: f32[1,128], index: 2, kind: input, shape index: {}]
  %s3 = inlined_call_operand.hbm [shape: f32[128,256], index: 3, kind: input, shape index: {}]
  %s4 = inlined_call_operand.vmem [shape: f32[1,256], index: 4, kind: input, shape index: {}]
  %s5 = inlined_call_operand.hbm [shape: f32[512,128], index: 5, kind: output, shape index: {0}]
  %s6 = inlined_call_operand.hbm [shape: f32[512,256], index: 6, kind: output, shape index: {1}]
  %7 = xla_tuple %s5, %s6
  %s8 = sld [smem:[#allocation0]]
  $region73: #{_lambda_.1} parent=0
    _
  %s10 = ssub.s32 1, %s8
  %s11 = scalar_select 0, %s10, %s8
  $region1: #{_lambda_.1} parent=0
    #allocation2 [shape = 'u8[524288]{0}', space=vmem, size = 0x80000, scoped, tag = 'input window, operand 0']
    #allocation3 [shape = 's32[2]{0}', space=sflag, size = 0x8, scoped, tag = 'scoped memory for _lambda_.1']
    #allocation4 [shape = 's32[2]{0}', space=sflag, size = 0x8, scoped, tag = 'scoped memory for _lambda_.1']
    #allocation5 [shape = 'u8[131072]{0}', space=vmem, size = 0x20000, scoped, tag = 'input window, operand 1, single buffered']
    #allocation6 [shape = 's32[1]{0}', space=sflag, size = 0x4, scoped, tag = 'scoped memory for _lambda_.1']
    #allocation7 [shape = 'u8[131072]{0}', space=vmem, size = 0x20000, scoped, tag = 'input window, operand 3, single buffered']
    #allocation8 [shape = 'u8[262144]{0}', space=vmem, size = 0x40000, scoped, tag = 'output window, operand 0']
    #allocation9 [shape = 'u8[524288]{0}', space=vmem, size = 0x80000, scoped, tag = 'output window, operand 1']
    #allocation10 [shape = 's32[2]{0}', space=sflag, size = 0x8, scoped, tag = 'scoped memory for _lambda_.1']
    %12 = vsyncpa [#allocation3], 0
    %s13 = scalar_lea.sflag [#allocation3], 1
    %14 = vsyncpa %s13, 0
    %15 = vsyncpa [#allocation6], 0
    %16 = vsyncpa [#allocation4], 0
    %s17 = scalar_lea.sflag [#allocation4], 1
    %18 = vsyncpa %s17, 0
    %19 = vsyncpa [#allocation10], 0
    %s20 = scalar_lea.sflag [#allocation10], 1
    %21 = vsyncpa %s20, 0
    loop: start=0, step=1, limit=4
    $region2: #{_lambda_.1} parent=1 // loop_pre_header
      _
    $region3: #{_lambda_.1} parent=1 // loop_header
      %s23 = sphi 0, %s27
      %p24 = scmp.ge.s32.totalorder %s23, 4
      %s33 = sphi 0, %s35
      %s36 = sphi 0, %s33
      %s37 = sphi 0, %s36
      %s53 = sphi 0, %s37
      %s57 = sphi 0, %s57
      %s59 = sphi 0, %s57
      %s60 = sphi 0, %s59
      %s74 = sphi 0, %s60
      %s78 = sphi 0, %s78
      %s80 = sphi 0, %s78
      %s81 = sphi 0, %s80
      %s95 = sphi 0, %s81
      %s99 = sphi 0, %s99
      %s101 = sphi 0, %s99
      %s102 = sphi 0, %s101
      %s116 = sphi 0, %s102
      %s120 = sphi 0, %s120
      %s122 = sphi 0, %s120
      %s123 = sphi 0, %s122
      %s137 = sphi 0, %s123
      %s143 = sphi 0, %s145
      %s146 = sphi 0, %s143
      %s147 = sphi 0, %s146
      %s163 = sphi 0, %s147
      %s169 = sphi 0, %s171
      %s172 = sphi 0, %s169
      %s173 = sphi 0, %s172
      %s189 = sphi 0, %s173
    $region4: #{_lambda_.1} parent=1 // loop_header_branch
      %26 = sbr.rel (%p24) target = $region8
    $region5: #{_lambda_.1} parent=1 // loop_body
      %s28 = ssub.s32 %s23, 1
      %s29 = ssub.s32 %s23, 2
      %s30 = sadd.s32 %s23, 1
      %s31 = ssub.s32 %s23, %s30
      %p32 = scmp.eq.s32.totalorder %s31, 0
      %s34 = sadd.s32 %s33, 1
      %s35 = scalar_select %p32, %s33, %s34
      %p38 = pneg %p32
      %p39 = scmp.eq.s32.totalorder %s23, 1
      %p40 = por %p38, %p39
      %p41 = scmp.ne.s32.totalorder %s33, %s36
      %p42 = scmp.eq.s32.totalorder %s23, 0
      %p43 = por %p41, %p42
      %p44 = scmp.ne.s32.totalorder %s33, %s36
      %p45 = scmp.eq.s32.totalorder %s28, 1
      %p46 = por %p44, %p45
      %p47 = scmp.ne.s32.totalorder %s36, %s37
      %p48 = scmp.eq.s32.totalorder %s28, 0
      %p49 = por %p47, %p48
      %p50 = scmp.ne.s32.totalorder %s36, %s37
      %p51 = scmp.eq.s32.totalorder %s29, 1
      %p52 = por %p50, %p51
      %p54 = scmp.ne.s32.totalorder %s37, %s53
      %p55 = scmp.eq.s32.totalorder %s29, 0
      %p56 = por %p54, %p55
      %s58 = sadd.s32 %s57, 1
      %p61 = scmp.eq.s32.totalorder %s23, 1
      %p62 = scmp.ne.s32.totalorder %s57, %s59
      %p63 = scmp.eq.s32.totalorder %s23, 0
      %p64 = por %p62, %p63
      %p65 = scmp.ne.s32.totalorder %s57, %s59
      %p66 = scmp.eq.s32.totalorder %s28, 1
      %p67 = por %p65, %p66
      %p68 = scmp.ne.s32.totalorder %s59, %s60
      %p69 = scmp.eq.s32.totalorder %s28, 0
      %p70 = por %p68, %p69
      %p71 = scmp.ne.s32.totalorder %s59, %s60
      %p72 = scmp.eq.s32.totalorder %s29, 1
      %p73 = por %p71, %p72
      %p75 = scmp.ne.s32.totalorder %s60, %s74
      %p76 = scmp.eq.s32.totalorder %s29, 0
      %p77 = por %p75, %p76
      %s79 = sadd.s32 %s78, 1
      %p82 = scmp.eq.s32.totalorder %s23, 1
      %p83 = scmp.ne.s32.totalorder %s78, %s80
      %p84 = scmp.eq.s32.totalorder %s23, 0
      %p85 = por %p83, %p84
      %p86 = scmp.ne.s32.totalorder %s78, %s80
      %p87 = scmp.eq.s32.totalorder %s28, 1
      %p88 = por %p86, %p87
      %p89 = scmp.ne.s32.totalorder %s80, %s81
      %p90 = scmp.eq.s32.totalorder %s28, 0
      %p91 = por %p89, %p90
      %p92 = scmp.ne.s32.totalorder %s80, %s81
      %p93 = scmp.eq.s32.totalorder %s29, 1
      %p94 = por %p92, %p93
      %p96 = scmp.ne.s32.totalorder %s81, %s95
      %p97 = scmp.eq.s32.totalorder %s29, 0
      %p98 = por %p96, %p97
      %s100 = sadd.s32 %s99, 1
      %p103 = scmp.eq.s32.totalorder %s23, 1
      %p104 = scmp.ne.s32.totalorder %s99, %s101
      %p105 = scmp.eq.s32.totalorder %s23, 0
      %p106 = por %p104, %p105
      %p107 = scmp.ne.s32.totalorder %s99, %s101
      %p108 = scmp.eq.s32.totalorder %s28, 1
      %p109 = por %p107, %p108
      %p110 = scmp.ne.s32.totalorder %s101, %s102
      %p111 = scmp.eq.s32.totalorder %s28, 0
      %p112 = por %p110, %p111
      %p113 = scmp.ne.s32.totalorder %s101, %s102
      %p114 = scmp.eq.s32.totalorder %s29, 1
      %p115 = por %p113, %p114
      %p117 = scmp.ne.s32.totalorder %s102, %s116
      %p118 = scmp.eq.s32.totalorder %s29, 0
      %p119 = por %p117, %p118
      %s121 = sadd.s32 %s120, 1
      %p124 = scmp.eq.s32.totalorder %s23, 1
      %p125 = scmp.ne.s32.totalorder %s120, %s122
      %p126 = scmp.eq.s32.totalorder %s23, 0
      %p127 = por %p125, %p126
      %p128 = scmp.ne.s32.totalorder %s120, %s122
      %p129 = scmp.eq.s32.totalorder %s28, 1
      %p130 = por %p128, %p129
      %p131 = scmp.ne.s32.totalorder %s122, %s123
      %p132 = scmp.eq.s32.totalorder %s28, 0
      %p133 = por %p131, %p132
      %p134 = scmp.ne.s32.totalorder %s122, %s123
      %p135 = scmp.eq.s32.totalorder %s29, 1
      %p136 = por %p134, %p135
      %p138 = scmp.ne.s32.totalorder %s123, %s137
      %p139 = scmp.eq.s32.totalorder %s29, 0
      %p140 = por %p138, %p139
      %s141 = ssub.s32 %s23, %s30
      %p142 = scmp.eq.s32.totalorder %s141, 0
      %s144 = sadd.s32 %s143, 1
      %s145 = scalar_select %p142, %s143, %s144
      %p148 = pneg %p142
      %p149 = scmp.eq.s32.totalorder %s23, 1
      %p150 = por %p148, %p149
      %p151 = scmp.ne.s32.totalorder %s143, %s146
      %p152 = scmp.eq.s32.totalorder %s23, 0
      %p153 = por %p151, %p152
      %p154 = scmp.ne.s32.totalorder %s143, %s146
      %p155 = scmp.eq.s32.totalorder %s28, 1
      %p156 = por %p154, %p155
      %p157 = scmp.ne.s32.totalorder %s146, %s147
      %p158 = scmp.eq.s32.totalorder %s28, 0
      %p159 = por %p157, %p158
      %p160 = scmp.ne.s32.totalorder %s146, %s147
      %p161 = scmp.eq.s32.totalorder %s29, 1
      %p162 = por %p160, %p161
      %p164 = scmp.ne.s32.totalorder %s147, %s163
      %p165 = scmp.eq.s32.totalorder %s29, 0
      %p166 = por %p164, %p165
      %s167 = ssub.s32 %s23, %s30
      %p168 = scmp.eq.s32.totalorder %s167, 0
      %s170 = sadd.s32 %s169, 1
      %s171 = scalar_select %p168, %s169, %s170
      %p174 = pneg %p168
      %p175 = scmp.eq.s32.totalorder %s23, 1
      %p176 = por %p174, %p175
      %p177 = scmp.ne.s32.totalorder %s169, %s172
      %p178 = scmp.eq.s32.totalorder %s23, 0
      %p179 = por %p177, %p178
      %p180 = scmp.ne.s32.totalorder %s169, %s172
      %p181 = scmp.eq.s32.totalorder %s28, 1
      %p182 = por %p180, %p181
      %p183 = scmp.ne.s32.totalorder %s172, %s173
      %p184 = scmp.eq.s32.totalorder %s28, 0
      %p185 = por %p183, %p184
      %p186 = scmp.ne.s32.totalorder %s172, %s173
      %p187 = scmp.eq.s32.totalorder %s29, 1
      %p188 = por %p186, %p187
      %p190 = scmp.ne.s32.totalorder %s173, %s189
      %p191 = scmp.eq.s32.totalorder %s29, 0
      %p192 = por %p190, %p191
      %p193 = scmp.le.s32.totalorder 1, %s23
      %p194 = scmp.lt.s32.totalorder %s23, 3
      %p195 = pnand %p193, %p194
      %p196 = pneg %p195
      // Predicated region
      $region9: #{_lambda_.1} parent=5 // pred_check
        _
      $region10: #{_lambda_.1} parent=5 // pred_check_branch
        %198 = sbr.rel (%p195) target = $region12
      $region11: #{_lambda_.1} parent=5 // pred_region
        %s199 = ssub.s32 %s23, 1
        // Predicated region
        $region13: #{_lambda_.1} parent=11 // pred_check
          %p200 = pneg %p70
        $region14: #{_lambda_.1} parent=11 // pred_check_branch
          %202 = sbr.rel (%p200) target = $region16
        $region15: #{_lambda_.1} parent=11 // pred_region
          %204 = vsyncadd [#allocation6], 0
          %s205 = sshll.u32 %s1, 4
          %s206 = int_to_ptr.hbm [resolvable:$true] %s205
          %s207 = sshll.u32 [#allocation5], 4
          %s208 = int_to_ptr.vmem [resolvable:$true] %s207
          %213 = dma.hbm_to_vmem [thread:$0]  %s206, 4096, %s208, [#allocation6], 128, 128, 8
        $region16: #{_lambda_.1} parent=11 // pred_fallthru
          _
        // Predicated region
        $region17: #{_lambda_.1} parent=11 // pred_check
          %p214 = pneg %p91
        $region18: #{_lambda_.1} parent=11 // pred_check_branch
          %216 = sbr.rel (%p214) target = $region20
        $region19: #{_lambda_.1} parent=11 // pred_region
          _
        $region20: #{_lambda_.1} parent=11 // pred_fallthru
          _
        // Predicated region
        $region21: #{_lambda_.1} parent=11 // pred_check
          %p217 = pneg %p112
        $region22: #{_lambda_.1} parent=11 // pred_check_branch
          %219 = sbr.rel (%p217) target = $region24
        $region23: #{_lambda_.1} parent=11 // pred_region
          %221 = vsyncadd [#allocation6], 0
          %s222 = sshll.u32 %s3, 4
          %s223 = int_to_ptr.hbm [resolvable:$true] %s222
          %s224 = sshll.u32 [#allocation7], 4
          %s225 = int_to_ptr.vmem [resolvable:$true] %s224
          %230 = dma.hbm_to_vmem [thread:$0]  %s223, 4096, %s225, [#allocation6], 256, 256, 16
        $region24: #{_lambda_.1} parent=11 // pred_fallthru
          _
        // Predicated region
        $region25: #{_lambda_.1} parent=11 // pred_check
          %p231 = pneg %p133
        $region26: #{_lambda_.1} parent=11 // pred_check_branch
          %233 = sbr.rel (%p231) target = $region28
        $region27: #{_lambda_.1} parent=11 // pred_region
          _
        $region28: #{_lambda_.1} parent=11 // pred_fallthru
          _
      $region12: #{_lambda_.1} parent=5 // pred_fallthru
        _
      %p234 = scmp.lt.s32.totalorder %s23, 2
      // Predicated region
      $region29: #{_lambda_.1} parent=5 // pred_check
        %p235 = pneg %p234
      $region30: #{_lambda_.1} parent=5 // pred_check_branch
        %237 = sbr.rel (%p235) target = $region32
      $region31: #{_lambda_.1} parent=5 // pred_region
        // Predicated region
        $region33: #{_lambda_.1} parent=31 // pred_check
          %p238 = pneg %p43
        $region34: #{_lambda_.1} parent=31 // pred_check_branch
          %240 = sbr.rel (%p238) target = $region36
        $region35: #{_lambda_.1} parent=31 // pred_region
          %s241 = sand.u32 %s33, 1
          %s242 = scalar_lea.sflag [#allocation3], %s241
          %s243 = sand.u32 %s33, 1
          %s244 = smul.addr %s243, 512
          %s245 = scalar_lea.vmem [#allocation2], %s244
          %s246 = smul.u32 32, %s23
          %248 = vsyncadd %s242, 0
          %s249 = smul.addr %s246, 2
          %s250 = smul.addr %s249, 8
          %s251 = scalar_lea.hbm %s0, %s250
          %s252 = sshll.u32 %s251, 4
          %s253 = int_to_ptr.hbm [resolvable:$true] %s252
          %s254 = sshll.u32 %s245, 4
          %s255 = int_to_ptr.vmem [resolvable:$true] %s254
          %260 = dma.hbm_to_vmem [thread:$0]  %s253, 8192, %s255, %s242, 256, 256, 16
        $region36: #{_lambda_.1} parent=31 // pred_fallthru
          _
      $region32: #{_lambda_.1} parent=5 // pred_fallthru
        _
      %p261 = scmp.le.s32.totalorder 1, %s23
      %p262 = scmp.lt.s32.totalorder %s23, 3
      %p263 = pnand %p261, %p262
      %p264 = pneg %p263
      // Predicated region
      $region37: #{_lambda_.1} parent=5 // pred_check
        _
      $region38: #{_lambda_.1} parent=5 // pred_check_branch
        %266 = sbr.rel (%p263) target = $region40
      $region39: #{_lambda_.1} parent=5 // pred_region
        %s267 = ssub.s32 %s23, 1
        %s268 = sand.u32 %s36, 1
        %s269 = scalar_lea.sflag [#allocation3], %s268
        %s270 = sand.u32 %s36, 1
        %s271 = smul.addr %s270, 512
        %s272 = scalar_lea.vmem [#allocation2], %s271
        // Predicated region
        $region41: #{_lambda_.1} parent=39 // pred_check
          %p273 = pneg %p49
        $region42: #{_lambda_.1} parent=39 // pred_check_branch
          %275 = sbr.rel (%p273) target = $region44
        $region43: #{_lambda_.1} parent=39 // pred_region
          %277 = dma.done %s269, 8192
        $region44: #{_lambda_.1} parent=39 // pred_fallthru
          _
        // Predicated region
        $region45: #{_lambda_.1} parent=39 // pred_check
          %p278 = pneg %p70
        $region46: #{_lambda_.1} parent=39 // pred_check_branch
          %280 = sbr.rel (%p278) target = $region48
        $region47: #{_lambda_.1} parent=39 // pred_region
          %282 = dma.done [#allocation6], 4096
        $region48: #{_lambda_.1} parent=39 // pred_fallthru
          _
        // Predicated region
        $region49: #{_lambda_.1} parent=39 // pred_check
          %p283 = pneg %p112
        $region50: #{_lambda_.1} parent=39 // pred_check_branch
          %285 = sbr.rel (%p283) target = $region52
        $region51: #{_lambda_.1} parent=39 // pred_region
          %287 = dma.done [#allocation6], 4096
        $region52: #{_lambda_.1} parent=39 // pred_fallthru
          _
        %s288 = sand.u32 %s36, 1
        %s289 = scalar_lea.sflag [#allocation3], %s288
        %s290 = sand.u32 %s36, 1
        %s291 = smul.addr %s290, 512
        %s292 = scalar_lea.vmem [#allocation2], %s291
        %p293 = pneg %p49
        %p294 = pneg %p46
        %p295 = pneg %p70
        %p296 = pneg %p67
        %p297 = pneg %p91
        %p298 = pneg %p88
        %p299 = pneg %p112
        %p300 = pneg %p109
        %p301 = pneg %p133
        %p302 = pneg %p130
        %p303 = pneg %p159
        %p304 = pneg %p156
        %s305 = sand.u32 %s146, 1
        %s306 = scalar_lea.sflag [#allocation4], %s305
        %s307 = sand.u32 %s146, 1
        %s308 = smul.addr %s307, 256
        %s309 = scalar_lea.vmem [#allocation8], %s308
        %p310 = pneg %p185
        %p311 = pneg %p182
        %s312 = sand.u32 %s172, 1
        %s313 = scalar_lea.sflag [#allocation10], %s312
        %s314 = sand.u32 %s172, 1
        %s315 = smul.addr %s314, 512
        %s316 = scalar_lea.vmem [#allocation9], %s315
        %s317 = smul.u32 32, %s28
        %s318 = smul.u32 32, %s28
        %s319 = smul.u32 32, %s28
        %v320 = vld [vmem:[%s272] sm:$0xff]
        %v321 = vld [vmem:[%s272 + $0x8] sm:$0xff]
        %v322 = vld [vmem:[%s272 + $0x10] sm:$0xff]
        %v323 = vld [vmem:[%s272 + $0x18] sm:$0xff]
        %v324 = vld [vmem:[%s272 + $0x20] sm:$0xff]
        %v325 = vld [vmem:[%s272 + $0x28] sm:$0xff]
        %v326 = vld [vmem:[%s272 + $0x30] sm:$0xff]
        %v327 = vld [vmem:[%s272 + $0x38] sm:$0xff]
        %v328 = vld [vmem:[%s272 + $0x40] sm:$0xff]
        %v329 = vld [vmem:[%s272 + $0x48] sm:$0xff]
        %v330 = vld [vmem:[%s272 + $0x50] sm:$0xff]
        %v331 = vld [vmem:[%s272 + $0x58] sm:$0xff]
        %v332 = vld [vmem:[%s272 + $0x60] sm:$0xff]
        %v333 = vld [vmem:[%s272 + $0x68] sm:$0xff]
        %v334 = vld [vmem:[%s272 + $0x70] sm:$0xff]
        %v335 = vld [vmem:[%s272 + $0x78] sm:$0xff]
        %v336 = vld [vmem:[%s272 + $0x80] sm:$0xff]
        %v337 = vld [vmem:[%s272 + $0x88] sm:$0xff]
        %v338 = vld [vmem:[%s272 + $0x90] sm:$0xff]
        %v339 = vld [vmem:[%s272 + $0x98] sm:$0xff]
        %v340 = vld [vmem:[%s272 + $0xa0] sm:$0xff]
        %v341 = vld [vmem:[%s272 + $0xa8] sm:$0xff]
        %v342 = vld [vmem:[%s272 + $0xb0] sm:$0xff]
        %v343 = vld [vmem:[%s272 + $0xb8] sm:$0xff]
        %v344 = vld [vmem:[%s272 + $0xc0] sm:$0xff]
        %v345 = vld [vmem:[%s272 + $0xc8] sm:$0xff]
        %v346 = vld [vmem:[%s272 + $0xd0] sm:$0xff]
        %v347 = vld [vmem:[%s272 + $0xd8] sm:$0xff]
        %v348 = vld [vmem:[%s272 + $0xe0] sm:$0xff]
        %v349 = vld [vmem:[%s272 + $0xe8] sm:$0xff]
        %v350 = vld [vmem:[%s272 + $0xf0] sm:$0xff]
        %v351 = vld [vmem:[%s272 + $0xf8] sm:$0xff]
        %v352 = vld [vmem:[%s272 + $0x100] sm:$0xff]
        %v353 = vld [vmem:[%s272 + $0x108] sm:$0xff]
        %v354 = vld [vmem:[%s272 + $0x110] sm:$0xff]
        %v355 = vld [vmem:[%s272 + $0x118] sm:$0xff]
        %v356 = vld [vmem:[%s272 + $0x120] sm:$0xff]
        %v357 = vld [vmem:[%s272 + $0x128] sm:$0xff]
        %v358 = vld [vmem:[%s272 + $0x130] sm:$0xff]
        %v359 = vld [vmem:[%s272 + $0x138] sm:$0xff]
        %v360 = vld [vmem:[%s272 + $0x140] sm:$0xff]
        %v361 = vld [vmem:[%s272 + $0x148] sm:$0xff]
        %v362 = vld [vmem:[%s272 + $0x150] sm:$0xff]
        %v363 = vld [vmem:[%s272 + $0x158] sm:$0xff]
        %v364 = vld [vmem:[%s272 + $0x160] sm:$0xff]
        %v365 = vld [vmem:[%s272 + $0x168] sm:$0xff]
        %v366 = vld [vmem:[%s272 + $0x170] sm:$0xff]
        %v367 = vld [vmem:[%s272 + $0x178] sm:$0xff]
        %v368 = vld [vmem:[%s272 + $0x180] sm:$0xff]
        %v369 = vld [vmem:[%s272 + $0x188] sm:$0xff]
        %v370 = vld [vmem:[%s272 + $0x190] sm:$0xff]
        %v371 = vld [vmem:[%s272 + $0x198] sm:$0xff]
        %v372 = vld [vmem:[%s272 + $0x1a0] sm:$0xff]
        %v373 = vld [vmem:[%s272 + $0x1a8] sm:$0xff]
        %v374 = vld [vmem:[%s272 + $0x1b0] sm:$0xff]
        %v375 = vld [vmem:[%s272 + $0x1b8] sm:$0xff]
        %v376 = vld [vmem:[%s272 + $0x1c0] sm:$0xff]
        %v377 = vld [vmem:[%s272 + $0x1c8] sm:$0xff]
        %v378 = vld [vmem:[%s272 + $0x1d0] sm:$0xff]
        %v379 = vld [vmem:[%s272 + $0x1d8] sm:$0xff]
        %v380 = vld [vmem:[%s272 + $0x1e0] sm:$0xff]
        %v381 = vld [vmem:[%s272 + $0x1e8] sm:$0xff]
        %v382 = vld [vmem:[%s272 + $0x1f0] sm:$0xff]
        %v383 = vld [vmem:[%s272 + $0x1f8] sm:$0xff]
        %v384 = vld [vmem:[#allocation5] sm:$0xff]
        %v385 = vld [vmem:[#allocation5 + $0x8] sm:$0xff]
        %v386 = vld [vmem:[#allocation5 + $0x10] sm:$0xff]
        %v387 = vld [vmem:[#allocation5 + $0x18] sm:$0xff]
        %v388 = vld [vmem:[#allocation5 + $0x20] sm:$0xff]
        %v389 = vld [vmem:[#allocation5 + $0x28] sm:$0xff]
        %v390 = vld [vmem:[#allocation5 + $0x30] sm:$0xff]
        %v391 = vld [vmem:[#allocation5 + $0x38] sm:$0xff]
        %v392 = vld [vmem:[#allocation5 + $0x40] sm:$0xff]
        %v393 = vld [vmem:[#allocation5 + $0x48] sm:$0xff]
        %v394 = vld [vmem:[#allocation5 + $0x50] sm:$0xff]
        %v395 = vld [vmem:[#allocation5 + $0x58] sm:$0xff]
        %v396 = vld [vmem:[#allocation5 + $0x60] sm:$0xff]
        %v397 = vld [vmem:[#allocation5 + $0x68] sm:$0xff]
        %v398 = vld [vmem:[#allocation5 + $0x70] sm:$0xff]
        %v399 = vld [vmem:[#allocation5 + $0x78] sm:$0xff]
        %v400 = vld [vmem:[#allocation5 + $0x80] sm:$0xff]
        %v401 = vld [vmem:[#allocation5 + $0x88] sm:$0xff]
        %v402 = vld [vmem:[#allocation5 + $0x90] sm:$0xff]
        %v403 = vld [vmem:[#allocation5 + $0x98] sm:$0xff]
        %v404 = vld [vmem:[#allocation5 + $0xa0] sm:$0xff]
        %v405 = vld [vmem:[#allocation5 + $0xa8] sm:$0xff]
        %v406 = vld [vmem:[#allocation5 + $0xb0] sm:$0xff]
        %v407 = vld [vmem:[#allocation5 + $0xb8] sm:$0xff]
        %v408 = vld [vmem:[#allocation5 + $0xc0] sm:$0xff]
        %v409 = vld [vmem:[#allocation5 + $0xc8] sm:$0xff]
        %v410 = vld [vmem:[#allocation5 + $0xd0] sm:$0xff]
        %v411 = vld [vmem:[#allocation5 + $0xd8] sm:$0xff]
        %v412 = vld [vmem:[#allocation5 + $0xe0] sm:$0xff]
        %v413 = vld [vmem:[#allocation5 + $0xe8] sm:$0xff]
        %v414 = vld [vmem:[#allocation5 + $0xf0] sm:$0xff]
        %v415 = vld [vmem:[#allocation5 + $0xf8] sm:$0xff]
        %v416 = vld [vmem:[%s2] sm:$0x1]
        %v418 = vperm.slane %v416, 0
        %420 = vmatpush.msra.mxu0 %v399
        %421 = vmatpush.msra.mxu0 %v398
        %422 = vmatpush.msra.mxu0 %v397
        %423 = vmatpush.msra.mxu0 %v396
        %424 = vmatpush.msra.mxu0 %v395
        %425 = vmatpush.msra.mxu0 %v394
        %426 = vmatpush.msra.mxu0 %v393
        %427 = vmatpush.msra.mxu0 %v392
        %428 = vmatpush.msra.mxu0 %v391
        %429 = vmatpush.msra.mxu0 %v390
        %430 = vmatpush.msra.mxu0 %v389
        %431 = vmatpush.msra.mxu0 %v388
        %432 = vmatpush.msra.mxu0 %v387
        %433 = vmatpush.msra.mxu0 %v386
        %434 = vmatpush.msra.mxu0 %v385
        %435 = vmatpush.msra.mxu0 %v384
        %436 = vmatmul.f32.gmra.mxu0 %v320
        %v437 = vpop.f32.mrf.mxu0
        %v438 = vadd.f32 %v418, %v437
        %439 = vmatmul.f32.gmra.mxu0 %v322
        %v440 = vpop.f32.mrf.mxu0
        %v441 = vadd.f32 %v418, %v440
        %442 = vmatmul.f32.gmra.mxu0 %v324
        %v443 = vpop.f32.mrf.mxu0
        %v444 = vadd.f32 %v418, %v443
        %445 = vmatmul.f32.gmra.mxu0 %v326
        %v446 = vpop.f32.mrf.mxu0
        %v447 = vadd.f32 %v418, %v446
        %448 = vmatmul.f32.gmra.mxu0 %v328
        %v449 = vpop.f32.mrf.mxu0
        %v450 = vadd.f32 %v418, %v449
        %451 = vmatmul.f32.gmra.mxu0 %v330
        %v452 = vpop.f32.mrf.mxu0
        %v453 = vadd.f32 %v418, %v452
        %454 = vmatmul.f32.gmra.mxu0 %v332
        %v455 = vpop.f32.mrf.mxu0
        %v456 = vadd.f32 %v418, %v455
        %457 = vmatmul.f32.gmra.mxu0 %v334
        %v458 = vpop.f32.mrf.mxu0
        %v459 = vadd.f32 %v418, %v458
        %460 = vmatmul.f32.gmra.mxu0 %v336
        %v461 = vpop.f32.mrf.mxu0
        %v462 = vadd.f32 %v418, %v461
        %463 = vmatmul.f32.gmra.mxu0 %v338
        %v464 = vpop.f32.mrf.mxu0
        %v465 = vadd.f32 %v418, %v464
        %466 = vmatmul.f32.gmra.mxu0 %v340
        %v467 = vpop.f32.mrf.mxu0
        %v468 = vadd.f32 %v418, %v467
        %469 = vmatmul.f32.gmra.mxu0 %v342
        %v470 = vpop.f32.mrf.mxu0
        %v471 = vadd.f32 %v418, %v470
        %472 = vmatmul.f32.gmra.mxu0 %v344
        %v473 = vpop.f32.mrf.mxu0
        %v474 = vadd.f32 %v418, %v473
        %475 = vmatmul.f32.gmra.mxu0 %v346
        %v476 = vpop.f32.mrf.mxu0
        %v477 = vadd.f32 %v418, %v476
        %478 = vmatmul.f32.gmra.mxu0 %v348
        %v479 = vpop.f32.mrf.mxu0
        %v480 = vadd.f32 %v418, %v479
        %481 = vmatmul.f32.gmra.mxu0 %v350
        %v482 = vpop.f32.mrf.mxu0
        %v483 = vadd.f32 %v418, %v482
        %484 = vmatmul.f32.gmra.mxu0 %v352
        %v485 = vpop.f32.mrf.mxu0
        %v486 = vadd.f32 %v418, %v485
        %487 = vmatmul.f32.gmra.mxu0 %v354
        %v488 = vpop.f32.mrf.mxu0
        %v489 = vadd.f32 %v418, %v488
        %490 = vmatmul.f32.gmra.mxu0 %v356
        %v491 = vpop.f32.mrf.mxu0
        %v492 = vadd.f32 %v418, %v491
        %493 = vmatmul.f32.gmra.mxu0 %v358
        %v494 = vpop.f32.mrf.mxu0
        %v495 = vadd.f32 %v418, %v494
        %496 = vmatmul.f32.gmra.mxu0 %v360
        %v497 = vpop.f32.mrf.mxu0
        %v498 = vadd.f32 %v418, %v497
        %499 = vmatmul.f32.gmra.mxu0 %v362
        %v500 = vpop.f32.mrf.mxu0
        %v501 = vadd.f32 %v418, %v500
        %502 = vmatmul.f32.gmra.mxu0 %v364
        %v503 = vpop.f32.mrf.mxu0
        %v504 = vadd.f32 %v418, %v503
        %505 = vmatmul.f32.gmra.mxu0 %v366
        %v506 = vpop.f32.mrf.mxu0
        %v507 = vadd.f32 %v418, %v506
        %508 = vmatmul.f32.gmra.mxu0 %v368
        %v509 = vpop.f32.mrf.mxu0
        %v510 = vadd.f32 %v418, %v509
        %511 = vmatmul.f32.gmra.mxu0 %v370
        %v512 = vpop.f32.mrf.mxu0
        %v513 = vadd.f32 %v418, %v512
        %514 = vmatmul.f32.gmra.mxu0 %v372
        %v515 = vpop.f32.mrf.mxu0
        %v516 = vadd.f32 %v418, %v515
        %517 = vmatmul.f32.gmra.mxu0 %v374
        %v518 = vpop.f32.mrf.mxu0
        %v519 = vadd.f32 %v418, %v518
        %520 = vmatmul.f32.gmra.mxu0 %v376
        %v521 = vpop.f32.mrf.mxu0
        %v522 = vadd.f32 %v418, %v521
        %523 = vmatmul.f32.gmra.mxu0 %v378
        %v524 = vpop.f32.mrf.mxu0
        %v525 = vadd.f32 %v418, %v524
        %526 = vmatmul.f32.gmra.mxu0 %v380
        %v527 = vpop.f32.mrf.mxu0
        %v528 = vadd.f32 %v418, %v527
        %529 = vmatmul.f32.gmra.mxu0 %v382
        %v530 = vpop.f32.mrf.mxu0
        %v531 = vadd.f32 %v418, %v530
        %532 = vdwg.mxu0
        %533 = vmatpush.msra.mxu0 %v415
        %534 = vmatpush.msra.mxu0 %v414
        %535 = vmatpush.msra.mxu0 %v413
        %536 = vmatpush.msra.mxu0 %v412
        %537 = vmatpush.msra.mxu0 %v411
        %538 = vmatpush.msra.mxu0 %v410
        %539 = vmatpush.msra.mxu0 %v409
        %540 = vmatpush.msra.mxu0 %v408
        %541 = vmatpush.msra.mxu0 %v407
        %542 = vmatpush.msra.mxu0 %v406
        %543 = vmatpush.msra.mxu0 %v405
        %544 = vmatpush.msra.mxu0 %v404
        %545 = vmatpush.msra.mxu0 %v403
        %546 = vmatpush.msra.mxu0 %v402
        %547 = vmatpush.msra.mxu0 %v401
        %548 = vmatpush.msra.mxu0 %v400
        %549 = vmatmul.f32.gmra.mxu0 %v321
        %v550 = vpop.f32.mrf.mxu0
        %v551 = vadd.f32 %v438, %v550
        %552 = vmatmul.f32.gmra.mxu0 %v323
        %v553 = vpop.f32.mrf.mxu0
        %v554 = vadd.f32 %v441, %v553
        %555 = vmatmul.f32.gmra.mxu0 %v325
        %v556 = vpop.f32.mrf.mxu0
        %v557 = vadd.f32 %v444, %v556
        %558 = vmatmul.f32.gmra.mxu0 %v327
        %v559 = vpop.f32.mrf.mxu0
        %v560 = vadd.f32 %v447, %v559
        %561 = vmatmul.f32.gmra.mxu0 %v329
        %v562 = vpop.f32.mrf.mxu0
        %v563 = vadd.f32 %v450, %v562
        %564 = vmatmul.f32.gmra.mxu0 %v331
        %v565 = vpop.f32.mrf.mxu0
        %v566 = vadd.f32 %v453, %v565
        %567 = vmatmul.f32.gmra.mxu0 %v333
        %v568 = vpop.f32.mrf.mxu0
        %v569 = vadd.f32 %v456, %v568
        %570 = vmatmul.f32.gmra.mxu0 %v335
        %v571 = vpop.f32.mrf.mxu0
        %v572 = vadd.f32 %v459, %v571
        %573 = vmatmul.f32.gmra.mxu0 %v337
        %v574 = vpop.f32.mrf.mxu0
        %v575 = vadd.f32 %v462, %v574
        %576 = vmatmul.f32.gmra.mxu0 %v339
        %v577 = vpop.f32.mrf.mxu0
        %v578 = vadd.f32 %v465, %v577
        %579 = vmatmul.f32.gmra.mxu0 %v341
        %v580 = vpop.f32.mrf.mxu0
        %v581 = vadd.f32 %v468, %v580
        %582 = vmatmul.f32.gmra.mxu0 %v343
        %v583 = vpop.f32.mrf.mxu0
        %v584 = vadd.f32 %v471, %v583
        %585 = vmatmul.f32.gmra.mxu0 %v345
        %v586 = vpop.f32.mrf.mxu0
        %v587 = vadd.f32 %v474, %v586
        %588 = vmatmul.f32.gmra.mxu0 %v347
        %v589 = vpop.f32.mrf.mxu0
        %v590 = vadd.f32 %v477, %v589
        %591 = vmatmul.f32.gmra.mxu0 %v349
        %v592 = vpop.f32.mrf.mxu0
        %v593 = vadd.f32 %v480, %v592
        %594 = vmatmul.f32.gmra.mxu0 %v351
        %v595 = vpop.f32.mrf.mxu0
        %v596 = vadd.f32 %v483, %v595
        %597 = vmatmul.f32.gmra.mxu0 %v353
        %v598 = vpop.f32.mrf.mxu0
        %v599 = vadd.f32 %v486, %v598
        %600 = vmatmul.f32.gmra.mxu0 %v355
        %v601 = vpop.f32.mrf.mxu0
        %v602 = vadd.f32 %v489, %v601
        %603 = vmatmul.f32.gmra.mxu0 %v357
        %v604 = vpop.f32.mrf.mxu0
        %v605 = vadd.f32 %v492, %v604
        %606 = vmatmul.f32.gmra.mxu0 %v359
        %v607 = vpop.f32.mrf.mxu0
        %v608 = vadd.f32 %v495, %v607
        %609 = vmatmul.f32.gmra.mxu0 %v361
        %v610 = vpop.f32.mrf.mxu0
        %v611 = vadd.f32 %v498, %v610
        %612 = vmatmul.f32.gmra.mxu0 %v363
        %v613 = vpop.f32.mrf.mxu0
        %v614 = vadd.f32 %v501, %v613
        %615 = vmatmul.f32.gmra.mxu0 %v365
        %v616 = vpop.f32.mrf.mxu0
        %v617 = vadd.f32 %v504, %v616
        %618 = vmatmul.f32.gmra.mxu0 %v367
        %v619 = vpop.f32.mrf.mxu0
        %v620 = vadd.f32 %v507, %v619
        %621 = vmatmul.f32.gmra.mxu0 %v369
        %v622 = vpop.f32.mrf.mxu0
        %v623 = vadd.f32 %v510, %v622
        %624 = vmatmul.f32.gmra.mxu0 %v371
        %v625 = vpop.f32.mrf.mxu0
        %v626 = vadd.f32 %v513, %v625
        %627 = vmatmul.f32.gmra.mxu0 %v373
        %v628 = vpop.f32.mrf.mxu0
        %v629 = vadd.f32 %v516, %v628
        %630 = vmatmul.f32.gmra.mxu0 %v375
        %v631 = vpop.f32.mrf.mxu0
        %v632 = vadd.f32 %v519, %v631
        %633 = vmatmul.f32.gmra.mxu0 %v377
        %v634 = vpop.f32.mrf.mxu0
        %v635 = vadd.f32 %v522, %v634
        %636 = vmatmul.f32.gmra.mxu0 %v379
        %v637 = vpop.f32.mrf.mxu0
        %v638 = vadd.f32 %v525, %v637
        %639 = vmatmul.f32.gmra.mxu0 %v381
        %v640 = vpop.f32.mrf.mxu0
        %v641 = vadd.f32 %v528, %v640
        %642 = vmatmul.f32.gmra.mxu0 %v383
        %v643 = vpop.f32.mrf.mxu0
        %v644 = vadd.f32 %v531, %v643
        %645 = vdwg.mxu0
        %v646 = vmax.f32 %v551, 0.0
        %v647 = vmax.f32 %v554, 0.0
        %v648 = vmax.f32 %v557, 0.0
        %v649 = vmax.f32 %v560, 0.0
        %v650 = vmax.f32 %v563, 0.0
        %v651 = vmax.f32 %v566, 0.0
        %v652 = vmax.f32 %v569, 0.0
        %v653 = vmax.f32 %v572, 0.0
        %v654 = vmax.f32 %v575, 0.0
        %v655 = vmax.f32 %v578, 0.0
        %v656 = vmax.f32 %v581, 0.0
        %v657 = vmax.f32 %v584, 0.0
        %v658 = vmax.f32 %v587, 0.0
        %v659 = vmax.f32 %v590, 0.0
        %v660 = vmax.f32 %v593, 0.0
        %v661 = vmax.f32 %v596, 0.0
        %v662 = vmax.f32 %v599, 0.0
        %v663 = vmax.f32 %v602, 0.0
        %v664 = vmax.f32 %v605, 0.0
        %v665 = vmax.f32 %v608, 0.0
        %v666 = vmax.f32 %v611, 0.0
        %v667 = vmax.f32 %v614, 0.0
        %v668 = vmax.f32 %v617, 0.0
        %v669 = vmax.f32 %v620, 0.0
        %v670 = vmax.f32 %v623, 0.0
        %v671 = vmax.f32 %v626, 0.0
        %v672 = vmax.f32 %v629, 0.0
        %v673 = vmax.f32 %v632, 0.0
        %v674 = vmax.f32 %v635, 0.0
        %v675 = vmax.f32 %v638, 0.0
        %v676 = vmax.f32 %v641, 0.0
        %v677 = vmax.f32 %v644, 0.0
        %678 = vst [vmem:[%s309] sm:$0xff] %v646
        %679 = vst [vmem:[%s309 + $0x8] sm:$0xff] %v647
        %680 = vst [vmem:[%s309 + $0x10] sm:$0xff] %v648
        %681 = vst [vmem:[%s309 + $0x18] sm:$0xff] %v649
        %682 = vst [vmem:[%s309 + $0x20] sm:$0xff] %v650
        %683 = vst [vmem:[%s309 + $0x28] sm:$0xff] %v651
        %684 = vst [vmem:[%s309 + $0x30] sm:$0xff] %v652
        %685 = vst [vmem:[%s309 + $0x38] sm:$0xff] %v653
        %686 = vst [vmem:[%s309 + $0x40] sm:$0xff] %v654
        %687 = vst [vmem:[%s309 + $0x48] sm:$0xff] %v655
        %688 = vst [vmem:[%s309 + $0x50] sm:$0xff] %v656
        %689 = vst [vmem:[%s309 + $0x58] sm:$0xff] %v657
        %690 = vst [vmem:[%s309 + $0x60] sm:$0xff] %v658
        %691 = vst [vmem:[%s309 + $0x68] sm:$0xff] %v659
        %692 = vst [vmem:[%s309 + $0x70] sm:$0xff] %v660
        %693 = vst [vmem:[%s309 + $0x78] sm:$0xff] %v661
        %694 = vst [vmem:[%s309 + $0x80] sm:$0xff] %v662
        %695 = vst [vmem:[%s309 + $0x88] sm:$0xff] %v663
        %696 = vst [vmem:[%s309 + $0x90] sm:$0xff] %v664
        %697 = vst [vmem:[%s309 + $0x98] sm:$0xff] %v665
        %698 = vst [vmem:[%s309 + $0xa0] sm:$0xff] %v666
        %699 = vst [vmem:[%s309 + $0xa8] sm:$0xff] %v667
        %700 = vst [vmem:[%s309 + $0xb0] sm:$0xff] %v668
        %701 = vst [vmem:[%s309 + $0xb8] sm:$0xff] %v669
        %702 = vst [vmem:[%s309 + $0xc0] sm:$0xff] %v670
        %703 = vst [vmem:[%s309 + $0xc8] sm:$0xff] %v671
        %704 = vst [vmem:[%s309 + $0xd0] sm:$0xff] %v672
        %705 = vst [vmem:[%s309 + $0xd8] sm:$0xff] %v673
        %706 = vst [vmem:[%s309 + $0xe0] sm:$0xff] %v674
        %707 = vst [vmem:[%s309 + $0xe8] sm:$0xff] %v675
        %708 = vst [vmem:[%s309 + $0xf0] sm:$0xff] %v676
        %709 = vst [vmem:[%s309 + $0xf8] sm:$0xff] %v677
        %v710 = vld [vmem:[#allocation7] sm:$0xff]
        %v711 = vld [vmem:[#allocation7 + $0x8] sm:$0xff]
        %v712 = vld [vmem:[#allocation7 + $0x10] sm:$0xff]
        %v713 = vld [vmem:[#allocation7 + $0x18] sm:$0xff]
        %v714 = vld [vmem:[#allocation7 + $0x20] sm:$0xff]
        %v715 = vld [vmem:[#allocation7 + $0x28] sm:$0xff]
        %v716 = vld [vmem:[#allocation7 + $0x30] sm:$0xff]
        %v717 = vld [vmem:[#allocation7 + $0x38] sm:$0xff]
        %v718 = vld [vmem:[#allocation7 + $0x40] sm:$0xff]
        %v719 = vld [vmem:[#allocation7 + $0x48] sm:$0xff]
        %v720 = vld [vmem:[#allocation7 + $0x50] sm:$0xff]
        %v721 = vld [vmem:[#allocation7 + $0x58] sm:$0xff]
        %v722 = vld [vmem:[#allocation7 + $0x60] sm:$0xff]
        %v723 = vld [vmem:[#allocation7 + $0x68] sm:$0xff]
        %v724 = vld [vmem:[#allocation7 + $0x70] sm:$0xff]
        %v725 = vld [vmem:[#allocation7 + $0x78] sm:$0xff]
        %v726 = vld [vmem:[#allocation7 + $0x80] sm:$0xff]
        %v727 = vld [vmem:[#allocation7 + $0x88] sm:$0xff]
        %v728 = vld [vmem:[#allocation7 + $0x90] sm:$0xff]
        %v729 = vld [vmem:[#allocation7 + $0x98] sm:$0xff]
        %v730 = vld [vmem:[#allocation7 + $0xa0] sm:$0xff]
        %v731 = vld [vmem:[#allocation7 + $0xa8] sm:$0xff]
        %v732 = vld [vmem:[#allocation7 + $0xb0] sm:$0xff]
        %v733 = vld [vmem:[#allocation7 + $0xb8] sm:$0xff]
        %v734 = vld [vmem:[#allocation7 + $0xc0] sm:$0xff]
        %v735 = vld [vmem:[#allocation7 + $0xc8] sm:$0xff]
        %v736 = vld [vmem:[#allocation7 + $0xd0] sm:$0xff]
        %v737 = vld [vmem:[#allocation7 + $0xd8] sm:$0xff]
        %v738 = vld [vmem:[#allocation7 + $0xe0] sm:$0xff]
        %v739 = vld [vmem:[#allocation7 + $0xe8] sm:$0xff]
        %v740 = vld [vmem:[#allocation7 + $0xf0] sm:$0xff]
        %v741 = vld [vmem:[#allocation7 + $0xf8] sm:$0xff]
        %v742 = vld [vmem:[%s4] sm:$0x3]
        %v744 = vperm.slane %v742, 0
        %v745 = vperm.slane %v742, 1
        %748 = vmatpush.msra.mxu0 %v740
        %749 = vmatpush.msra.mxu0 %v738
        %750 = vmatpush.msra.mxu0 %v736
        %751 = vmatpush.msra.mxu0 %v734
        %752 = vmatpush.msra.mxu0 %v732
        %753 = vmatpush.msra.mxu0 %v730
        %754 = vmatpush.msra.mxu0 %v728
        %755 = vmatpush.msra.mxu0 %v726
        %756 = vmatpush.msra.mxu0 %v724
        %757 = vmatpush.msra.mxu0 %v722
        %758 = vmatpush.msra.mxu0 %v720
        %759 = vmatpush.msra.mxu0 %v718
        %760 = vmatpush.msra.mxu0 %v716
        %761 = vmatpush.msra.mxu0 %v714
        %762 = vmatpush.msra.mxu0 %v712
        %763 = vmatpush.msra.mxu0 %v710
        %764 = vmatmul.f32.gmra.mxu0 %v646
        %v765 = vpop.f32.mrf.mxu0
        %v766 = vadd.f32 %v744, %v765
        %767 = vmatmul.f32.gmra.mxu0 %v647
        %v768 = vpop.f32.mrf.mxu0
        %v769 = vadd.f32 %v744, %v768
        %770 = vmatmul.f32.gmra.mxu0 %v648
        %v771 = vpop.f32.mrf.mxu0
        %v772 = vadd.f32 %v744, %v771
        %773 = vmatmul.f32.gmra.mxu0 %v649
        %v774 = vpop.f32.mrf.mxu0
        %v775 = vadd.f32 %v744, %v774
        %776 = vmatmul.f32.gmra.mxu0 %v650
        %v777 = vpop.f32.mrf.mxu0
        %v778 = vadd.f32 %v744, %v777
        %779 = vmatmul.f32.gmra.mxu0 %v651
        %v780 = vpop.f32.mrf.mxu0
        %v781 = vadd.f32 %v744, %v780
        %782 = vmatmul.f32.gmra.mxu0 %v652
        %v783 = vpop.f32.mrf.mxu0
        %v784 = vadd.f32 %v744, %v783
        %785 = vmatmul.f32.gmra.mxu0 %v653
        %v786 = vpop.f32.mrf.mxu0
        %v787 = vadd.f32 %v744, %v786
        %788 = vmatmul.f32.gmra.mxu0 %v654
        %v789 = vpop.f32.mrf.mxu0
        %v790 = vadd.f32 %v744, %v789
        %791 = vmatmul.f32.gmra.mxu0 %v655
        %v792 = vpop.f32.mrf.mxu0
        %v793 = vadd.f32 %v744, %v792
        %794 = vmatmul.f32.gmra.mxu0 %v656
        %v795 = vpop.f32.mrf.mxu0
        %v796 = vadd.f32 %v744, %v795
        %797 = vmatmul.f32.gmra.mxu0 %v657
        %v798 = vpop.f32.mrf.mxu0
        %v799 = vadd.f32 %v744, %v798
        %800 = vmatmul.f32.gmra.mxu0 %v658
        %v801 = vpop.f32.mrf.mxu0
        %v802 = vadd.f32 %v744, %v801
        %803 = vmatmul.f32.gmra.mxu0 %v659
        %v804 = vpop.f32.mrf.mxu0
        %v805 = vadd.f32 %v744, %v804
        %806 = vmatmul.f32.gmra.mxu0 %v660
        %v807 = vpop.f32.mrf.mxu0
        %v808 = vadd.f32 %v744, %v807
        %809 = vmatmul.f32.gmra.mxu0 %v661
        %v810 = vpop.f32.mrf.mxu0
        %v811 = vadd.f32 %v744, %v810
        %812 = vmatmul.f32.gmra.mxu0 %v662
        %v813 = vpop.f32.mrf.mxu0
        %v814 = vadd.f32 %v744, %v813
        %815 = vmatmul.f32.gmra.mxu0 %v663
        %v816 = vpop.f32.mrf.mxu0
        %v817 = vadd.f32 %v744, %v816
        %818 = vmatmul.f32.gmra.mxu0 %v664
        %v819 = vpop.f32.mrf.mxu0
        %v820 = vadd.f32 %v744, %v819
        %821 = vmatmul.f32.gmra.mxu0 %v665
        %v822 = vpop.f32.mrf.mxu0
        %v823 = vadd.f32 %v744, %v822
        %824 = vmatmul.f32.gmra.mxu0 %v666
        %v825 = vpop.f32.mrf.mxu0
        %v826 = vadd.f32 %v744, %v825
        %827 = vmatmul.f32.gmra.mxu0 %v667
        %v828 = vpop.f32.mrf.mxu0
        %v829 = vadd.f32 %v744, %v828
        %830 = vmatmul.f32.gmra.mxu0 %v668
        %v831 = vpop.f32.mrf.mxu0
        %v832 = vadd.f32 %v744, %v831
        %833 = vmatmul.f32.gmra.mxu0 %v669
        %v834 = vpop.f32.mrf.mxu0
        %v835 = vadd.f32 %v744, %v834
        %836 = vmatmul.f32.gmra.mxu0 %v670
        %v837 = vpop.f32.mrf.mxu0
        %v838 = vadd.f32 %v744, %v837
        %839 = vmatmul.f32.gmra.mxu0 %v671
        %v840 = vpop.f32.mrf.mxu0
        %v841 = vadd.f32 %v744, %v840
        %842 = vmatmul.f32.gmra.mxu0 %v672
        %v843 = vpop.f32.mrf.mxu0
        %v844 = vadd.f32 %v744, %v843
        %845 = vmatmul.f32.gmra.mxu0 %v673
        %v846 = vpop.f32.mrf.mxu0
        %v847 = vadd.f32 %v744, %v846
        %848 = vmatmul.f32.gmra.mxu0 %v674
        %v849 = vpop.f32.mrf.mxu0
        %v850 = vadd.f32 %v744, %v849
        %851 = vmatmul.f32.gmra.mxu0 %v675
        %v852 = vpop.f32.mrf.mxu0
        %v853 = vadd.f32 %v744, %v852
        %854 = vmatmul.f32.gmra.mxu0 %v676
        %v855 = vpop.f32.mrf.mxu0
        %v856 = vadd.f32 %v744, %v855
        %857 = vmatmul.f32.gmra.mxu0 %v677
        %v858 = vpop.f32.mrf.mxu0
        %v859 = vadd.f32 %v744, %v858
        %860 = vdwg.mxu0
        %861 = vmatpush.msra.mxu0 %v741
        %862 = vmatpush.msra.mxu0 %v739
        %863 = vmatpush.msra.mxu0 %v737
        %864 = vmatpush.msra.mxu0 %v735
        %865 = vmatpush.msra.mxu0 %v733
        %866 = vmatpush.msra.mxu0 %v731
        %867 = vmatpush.msra.mxu0 %v729
        %868 = vmatpush.msra.mxu0 %v727
        %869 = vmatpush.msra.mxu0 %v725
        %870 = vmatpush.msra.mxu0 %v723
        %871 = vmatpush.msra.mxu0 %v721
        %872 = vmatpush.msra.mxu0 %v719
        %873 = vmatpush.msra.mxu0 %v717
        %874 = vmatpush.msra.mxu0 %v715
        %875 = vmatpush.msra.mxu0 %v713
        %876 = vmatpush.msra.mxu0 %v711
        %877 = vmatmul.f32.gmra.mxu0 %v646
        %v878 = vpop.f32.mrf.mxu0
        %v879 = vadd.f32 %v745, %v878
        %880 = vmatmul.f32.gmra.mxu0 %v647
        %v881 = vpop.f32.mrf.mxu0
        %v882 = vadd.f32 %v745, %v881
        %883 = vmatmul.f32.gmra.mxu0 %v648
        %v884 = vpop.f32.mrf.mxu0
        %v885 = vadd.f32 %v745, %v884
        %886 = vmatmul.f32.gmra.mxu0 %v649
        %v887 = vpop.f32.mrf.mxu0
        %v888 = vadd.f32 %v745, %v887
        %889 = vmatmul.f32.gmra.mxu0 %v650
        %v890 = vpop.f32.mrf.mxu0
        %v891 = vadd.f32 %v745, %v890
        %892 = vmatmul.f32.gmra.mxu0 %v651
        %v893 = vpop.f32.mrf.mxu0
        %v894 = vadd.f32 %v745, %v893
        %895 = vmatmul.f32.gmra.mxu0 %v652
        %v896 = vpop.f32.mrf.mxu0
        %v897 = vadd.f32 %v745, %v896
        %898 = vmatmul.f32.gmra.mxu0 %v653
        %v899 = vpop.f32.mrf.mxu0
        %v900 = vadd.f32 %v745, %v899
        %901 = vmatmul.f32.gmra.mxu0 %v654
        %v902 = vpop.f32.mrf.mxu0
        %v903 = vadd.f32 %v745, %v902
        %904 = vmatmul.f32.gmra.mxu0 %v655
        %v905 = vpop.f32.mrf.mxu0
        %v906 = vadd.f32 %v745, %v905
        %907 = vmatmul.f32.gmra.mxu0 %v656
        %v908 = vpop.f32.mrf.mxu0
        %v909 = vadd.f32 %v745, %v908
        %910 = vmatmul.f32.gmra.mxu0 %v657
        %v911 = vpop.f32.mrf.mxu0
        %v912 = vadd.f32 %v745, %v911
        %913 = vmatmul.f32.gmra.mxu0 %v658
        %v914 = vpop.f32.mrf.mxu0
        %v915 = vadd.f32 %v745, %v914
        %916 = vmatmul.f32.gmra.mxu0 %v659
        %v917 = vpop.f32.mrf.mxu0
        %v918 = vadd.f32 %v745, %v917
        %919 = vmatmul.f32.gmra.mxu0 %v660
        %v920 = vpop.f32.mrf.mxu0
        %v921 = vadd.f32 %v745, %v920
        %922 = vmatmul.f32.gmra.mxu0 %v661
        %v923 = vpop.f32.mrf.mxu0
        %v924 = vadd.f32 %v745, %v923
        %925 = vmatmul.f32.gmra.mxu0 %v662
        %v926 = vpop.f32.mrf.mxu0
        %v927 = vadd.f32 %v745, %v926
        %928 = vmatmul.f32.gmra.mxu0 %v663
        %v929 = vpop.f32.mrf.mxu0
        %v930 = vadd.f32 %v745, %v929
        %931 = vmatmul.f32.gmra.mxu0 %v664
        %v932 = vpop.f32.mrf.mxu0
        %v933 = vadd.f32 %v745, %v932
        %934 = vmatmul.f32.gmra.mxu0 %v665
        %v935 = vpop.f32.mrf.mxu0
        %v936 = vadd.f32 %v745, %v935
        %937 = vmatmul.f32.gmra.mxu0 %v666
        %v938 = vpop.f32.mrf.mxu0
        %v939 = vadd.f32 %v745, %v938
        %940 = vmatmul.f32.gmra.mxu0 %v667
        %v941 = vpop.f32.mrf.mxu0
        %v942 = vadd.f32 %v745, %v941
        %943 = vmatmul.f32.gmra.mxu0 %v668
        %v944 = vpop.f32.mrf.mxu0
        %v945 = vadd.f32 %v745, %v944
        %946 = vmatmul.f32.gmra.mxu0 %v669
        %v947 = vpop.f32.mrf.mxu0
        %v948 = vadd.f32 %v745, %v947
        %949 = vmatmul.f32.gmra.mxu0 %v670
        %v950 = vpop.f32.mrf.mxu0
        %v951 = vadd.f32 %v745, %v950
        %952 = vmatmul.f32.gmra.mxu0 %v671
        %v953 = vpop.f32.mrf.mxu0
        %v954 = vadd.f32 %v745, %v953
        %955 = vmatmul.f32.gmra.mxu0 %v672
        %v956 = vpop.f32.mrf.mxu0
        %v957 = vadd.f32 %v745, %v956
        %958 = vmatmul.f32.gmra.mxu0 %v673
        %v959 = vpop.f32.mrf.mxu0
        %v960 = vadd.f32 %v745, %v959
        %961 = vmatmul.f32.gmra.mxu0 %v674
        %v962 = vpop.f32.mrf.mxu0
        %v963 = vadd.f32 %v745, %v962
        %964 = vmatmul.f32.gmra.mxu0 %v675
        %v965 = vpop.f32.mrf.mxu0
        %v966 = vadd.f32 %v745, %v965
        %967 = vmatmul.f32.gmra.mxu0 %v676
        %v968 = vpop.f32.mrf.mxu0
        %v969 = vadd.f32 %v745, %v968
        %970 = vmatmul.f32.gmra.mxu0 %v677
        %v971 = vpop.f32.mrf.mxu0
        %v972 = vadd.f32 %v745, %v971
        %973 = vdwg.mxu0
        %974 = vst [vmem:[%s316] sm:$0xff] %v766
        %975 = vst [vmem:[%s316 + $0x8] sm:$0xff] %v879
        %976 = vst [vmem:[%s316 + $0x10] sm:$0xff] %v769
        %977 = vst [vmem:[%s316 + $0x18] sm:$0xff] %v882
        %978 = vst [vmem:[%s316 + $0x20] sm:$0xff] %v772
        %979 = vst [vmem:[%s316 + $0x28] sm:$0xff] %v885
        %980 = vst [vmem:[%s316 + $0x30] sm:$0xff] %v775
        %981 = vst [vmem:[%s316 + $0x38] sm:$0xff] %v888
        %982 = vst [vmem:[%s316 + $0x40] sm:$0xff] %v778
        %983 = vst [vmem:[%s316 + $0x48] sm:$0xff] %v891
        %984 = vst [vmem:[%s316 + $0x50] sm:$0xff] %v781
        %985 = vst [vmem:[%s316 + $0x58] sm:$0xff] %v894
        %986 = vst [vmem:[%s316 + $0x60] sm:$0xff] %v784
        %987 = vst [vmem:[%s316 + $0x68] sm:$0xff] %v897
        %988 = vst [vmem:[%s316 + $0x70] sm:$0xff] %v787
        %989 = vst [vmem:[%s316 + $0x78] sm:$0xff] %v900
        %990 = vst [vmem:[%s316 + $0x80] sm:$0xff] %v790
        %991 = vst [vmem:[%s316 + $0x88] sm:$0xff] %v903
        %992 = vst [vmem:[%s316 + $0x90] sm:$0xff] %v793
        %993 = vst [vmem:[%s316 + $0x98] sm:$0xff] %v906
        %994 = vst [vmem:[%s316 + $0xa0] sm:$0xff] %v796
        %995 = vst [vmem:[%s316 + $0xa8] sm:$0xff] %v909
        %996 = vst [vmem:[%s316 + $0xb0] sm:$0xff] %v799
        %997 = vst [vmem:[%s316 + $0xb8] sm:$0xff] %v912
        %998 = vst [vmem:[%s316 + $0xc0] sm:$0xff] %v802
        %999 = vst [vmem:[%s316 + $0xc8] sm:$0xff] %v915
        %1000 = vst [vmem:[%s316 + $0xd0] sm:$0xff] %v805
        %1001 = vst [vmem:[%s316 + $0xd8] sm:$0xff] %v918
        %1002 = vst [vmem:[%s316 + $0xe0] sm:$0xff] %v808
        %1003 = vst [vmem:[%s316 + $0xe8] sm:$0xff] %v921
        %1004 = vst [vmem:[%s316 + $0xf0] sm:$0xff] %v811
        %1005 = vst [vmem:[%s316 + $0xf8] sm:$0xff] %v924
        %1006 = vst [vmem:[%s316 + $0x100] sm:$0xff] %v814
        %1007 = vst [vmem:[%s316 + $0x108] sm:$0xff] %v927
        %1008 = vst [vmem:[%s316 + $0x110] sm:$0xff] %v817
        %1009 = vst [vmem:[%s316 + $0x118] sm:$0xff] %v930
        %1010 = vst [vmem:[%s316 + $0x120] sm:$0xff] %v820
        %1011 = vst [vmem:[%s316 + $0x128] sm:$0xff] %v933
        %1012 = vst [vmem:[%s316 + $0x130] sm:$0xff] %v823
        %1013 = vst [vmem:[%s316 + $0x138] sm:$0xff] %v936
        %1014 = vst [vmem:[%s316 + $0x140] sm:$0xff] %v826
        %1015 = vst [vmem:[%s316 + $0x148] sm:$0xff] %v939
        %1016 = vst [vmem:[%s316 + $0x150] sm:$0xff] %v829
        %1017 = vst [vmem:[%s316 + $0x158] sm:$0xff] %v942
        %1018 = vst [vmem:[%s316 + $0x160] sm:$0xff] %v832
        %1019 = vst [vmem:[%s316 + $0x168] sm:$0xff] %v945
        %1020 = vst [vmem:[%s316 + $0x170] sm:$0xff] %v835
        %1021 = vst [vmem:[%s316 + $0x178] sm:$0xff] %v948
        %1022 = vst [vmem:[%s316 + $0x180] sm:$0xff] %v838
        %1023 = vst [vmem:[%s316 + $0x188] sm:$0xff] %v951
        %1024 = vst [vmem:[%s316 + $0x190] sm:$0xff] %v841
        %1025 = vst [vmem:[%s316 + $0x198] sm:$0xff] %v954
        %1026 = vst [vmem:[%s316 + $0x1a0] sm:$0xff] %v844
        %1027 = vst [vmem:[%s316 + $0x1a8] sm:$0xff] %v957
        %1028 = vst [vmem:[%s316 + $0x1b0] sm:$0xff] %v847
        %1029 = vst [vmem:[%s316 + $0x1b8] sm:$0xff] %v960
        %1030 = vst [vmem:[%s316 + $0x1c0] sm:$0xff] %v850
        %1031 = vst [vmem:[%s316 + $0x1c8] sm:$0xff] %v963
        %1032 = vst [vmem:[%s316 + $0x1d0] sm:$0xff] %v853
        %1033 = vst [vmem:[%s316 + $0x1d8] sm:$0xff] %v966
        %1034 = vst [vmem:[%s316 + $0x1e0] sm:$0xff] %v856
        %1035 = vst [vmem:[%s316 + $0x1e8] sm:$0xff] %v969
        %1036 = vst [vmem:[%s316 + $0x1f0] sm:$0xff] %v859
        %1037 = vst [vmem:[%s316 + $0x1f8] sm:$0xff] %v972
        %s1038 = sand.u32 %s146, 1
        %s1039 = scalar_lea.sflag [#allocation4], %s1038
        %s1040 = sand.u32 %s146, 1
        %s1041 = smul.addr %s1040, 256
        %s1042 = scalar_lea.vmem [#allocation8], %s1041
        %s1043 = sand.u32 %s172, 1
        %s1044 = scalar_lea.sflag [#allocation10], %s1043
        %s1045 = sand.u32 %s172, 1
        %s1046 = smul.addr %s1045, 512
        %s1047 = scalar_lea.vmem [#allocation9], %s1046
        // Predicated region
        $region53: #{_lambda_.1} parent=39 // pred_check
          %p1048 = pneg %p156
        $region54: #{_lambda_.1} parent=39 // pred_check_branch
          %1050 = sbr.rel (%p1048) target = $region56
        $region55: #{_lambda_.1} parent=39 // pred_region
          %s1051 = smul.u32 32, %s28
          %1053 = vsyncadd %s1039, 0
          %s1054 = smul.addr %s1051, 8
          %s1055 = scalar_lea.hbm %s5, %s1054
          %s1056 = sshll.u32 %s1042, 4
          %s1057 = int_to_ptr.vmem [resolvable:$true] %s1056
          %s1058 = sshll.u32 %s1055, 4
          %s1059 = int_to_ptr.hbm [resolvable:$true] %s1058
          %1064 = dma.vmem_to_hbm [thread:$0]  %s1057, 4096, %s1059, %s1039, 128, 128, 8
        $region56: #{_lambda_.1} parent=39 // pred_fallthru
          _
        // Predicated region
        $region57: #{_lambda_.1} parent=39 // pred_check
          %p1065 = pneg %p182
        $region58: #{_lambda_.1} parent=39 // pred_check_branch
          %1067 = sbr.rel (%p1065) target = $region60
        $region59: #{_lambda_.1} parent=39 // pred_region
          %s1068 = smul.u32 32, %s28
          %1070 = vsyncadd %s1044, 0
          %s1071 = smul.addr %s1068, 2
          %s1072 = smul.addr %s1071, 8
          %s1073 = scalar_lea.hbm %s6, %s1072
          %s1074 = sshll.u32 %s1047, 4
          %s1075 = int_to_ptr.vmem [resolvable:$true] %s1074
          %s1076 = sshll.u32 %s1073, 4
          %s1077 = int_to_ptr.hbm [resolvable:$true] %s1076
          %1082 = dma.vmem_to_hbm [thread:$0]  %s1075, 8192, %s1077, %s1044, 256, 256, 16
        $region60: #{_lambda_.1} parent=39 // pred_fallthru
          _
      $region40: #{_lambda_.1} parent=5 // pred_fallthru
        _
      %p1083 = scmp.le.s32.totalorder 2, %s23
      // Predicated region
      $region61: #{_lambda_.1} parent=5 // pred_check
        %p1084 = pneg %p1083
      $region62: #{_lambda_.1} parent=5 // pred_check_branch
        %1086 = sbr.rel (%p1084) target = $region64
      $region63: #{_lambda_.1} parent=5 // pred_region
        %s1087 = ssub.s32 %s23, 2
        // Predicated region
        $region65: #{_lambda_.1} parent=63 // pred_check
          %p1088 = pneg %p162
        $region66: #{_lambda_.1} parent=63 // pred_check_branch
          %1090 = sbr.rel (%p1088) target = $region68
        $region67: #{_lambda_.1} parent=63 // pred_region
          %s1091 = sand.u32 %s147, 1
          %s1092 = scalar_lea.sflag [#allocation4], %s1091
          %s1093 = sand.u32 %s147, 1
          %s1094 = smul.addr %s1093, 256
          %s1095 = scalar_lea.vmem [#allocation8], %s1094
          %1097 = dma.done %s1092, 4096
        $region68: #{_lambda_.1} parent=63 // pred_fallthru
          _
        // Predicated region
        $region69: #{_lambda_.1} parent=63 // pred_check
          %p1098 = pneg %p188
        $region70: #{_lambda_.1} parent=63 // pred_check_branch
          %1100 = sbr.rel (%p1098) target = $region72
        $region71: #{_lambda_.1} parent=63 // pred_region
          %s1101 = sand.u32 %s173, 1
          %s1102 = scalar_lea.sflag [#allocation10], %s1101
          %s1103 = sand.u32 %s173, 1
          %s1104 = smul.addr %s1103, 512
          %s1105 = scalar_lea.vmem [#allocation9], %s1104
          %1107 = dma.done %s1102, 8192
        $region72: #{_lambda_.1} parent=63 // pred_fallthru
          _
      $region64: #{_lambda_.1} parent=5 // pred_fallthru
        _
    $region6: #{_lambda_.1} parent=1 // loop_footer
      %s27 = sadd.s32 1, %s23
    $region7: #{_lambda_.1} parent=1 // loop_footer_branch
      %22 = sbr.rel target = $region3
    $region8: #{_lambda_.1} parent=1 // loop_exit
      _
    %1108 = vsyncpa [#allocation3], 1
    %s1109 = scalar_lea.sflag [#allocation3], 1
    %1110 = vsyncpa %s1109, 1
    %1111 = vsyncpa [#allocation6], 1
    %1112 = vsyncpa [#allocation4], 1
    %s1113 = scalar_lea.sflag [#allocation4], 1
    %1114 = vsyncpa %s1113, 1
    %1115 = vsyncpa [#allocation10], 1
    %s1116 = scalar_lea.sflag [#allocation10], 1
    %1117 = vsyncpa %s1116, 1

// kernel: _lambda_.1
$region0: #{_lambda_.1}
  #allocation0 [shape = 'u32[]', space=smem, size = 0x4, offset = 0x4, fixed_abs, tag = 'smem constant byte address 0x4 - core index']
  #allocation1 [shape = 'u32[72,128]{1,0:T(1,128)}', space=vmem, size = 0x9000, scoped, tag = 'internal scratch']
  %s0 = inlined_call_operand.hbm [shape: f32[512,256], index: 0, kind: input, shape index: {}]
  %s1 = inlined_call_operand.hbm [shape: f32[256,128], index: 1, kind: input, shape index: {}]
  %s2 = inlined_call_operand.vmem [shape: f32[1,128], index: 2, kind: input, shape index: {}]
  %s3 = inlined_call_operand.hbm [shape: f32[128,256], index: 3, kind: input, shape index: {}]
  %s4 = inlined_call_operand.vmem [shape: f32[1,256], index: 4, kind: input, shape index: {}]
  %s5 = inlined_call_operand.hbm [shape: f32[512,128], index: 5, kind: output, shape index: {0}]
  %s6 = inlined_call_operand.hbm [shape: f32[512,256], index: 6, kind: output, shape index: {1}]
  %7 = xla_tuple %s5, %s6
  %s8 = sld [smem:[#allocation0]]
  $region73: #{_lambda_.1} parent=0
    _
  %s10 = ssub.s32 1, %s8
  %s11 = scalar_select 0, %s10, %s8
  $region1: #{_lambda_.1} parent=0
    #allocation2 [shape = 'u8[524288]{0}', space=vmem, size = 0x80000, scoped, tag = 'input window, operand 0']
    #allocation3 [shape = 's32[2]{0}', space=sflag, size = 0x8, scoped, tag = 'scoped memory for _lambda_.1']
    #allocation4 [shape = 's32[2]{0}', space=sflag, size = 0x8, scoped, tag = 'scoped memory for _lambda_.1']
    #allocation5 [shape = 'u8[131072]{0}', space=vmem, size = 0x20000, scoped, tag = 'input window, operand 1, single buffered']
    #allocation6 [shape = 's32[1]{0}', space=sflag, size = 0x4, scoped, tag = 'scoped memory for _lambda_.1']
    #allocation7 [shape = 'u8[131072]{0}', space=vmem, size = 0x20000, scoped, tag = 'input window, operand 3, single buffered']
    #allocation8 [shape = 'u8[262144]{0}', space=vmem, size = 0x40000, scoped, tag = 'output window, operand 0']
    #allocation9 [shape = 'u8[524288]{0}', space=vmem, size = 0x80000, scoped, tag = 'output window, operand 1']
    #allocation10 [shape = 's32[2]{0}', space=sflag, size = 0x8, scoped, tag = 'scoped memory for _lambda_.1']
    %12 = vsyncpa [#allocation3], 0
    %s13 = scalar_lea.sflag [#allocation3], 1
    %14 = vsyncpa %s13, 0
    %15 = vsyncpa [#allocation6], 0
    %16 = vsyncpa [#allocation4], 0
    %s17 = scalar_lea.sflag [#allocation4], 1
    %18 = vsyncpa %s17, 0
    %19 = vsyncpa [#allocation10], 0
    %s20 = scalar_lea.sflag [#allocation10], 1
    %21 = vsyncpa %s20, 0
    loop: start=0, step=1, limit=4
    $region2: #{_lambda_.1} parent=1 // loop_pre_header
      _
    $region3: #{_lambda_.1} parent=1 // loop_header
      %s23 = sphi 0, %s27
      %p24 = scmp.ge.s32.totalorder %s23, 4
      %s33 = sphi 0, %s35
      %s36 = sphi 0, %s33
      %s37 = sphi 0, %s36
      %s53 = sphi 0, %s37
      %s57 = sphi 0, %s57
      %s59 = sphi 0, %s57
      %s60 = sphi 0, %s59
      %s74 = sphi 0, %s60
      %s78 = sphi 0, %s78
      %s80 = sphi 0, %s78
      %s81 = sphi 0, %s80
      %s95 = sphi 0, %s81
      %s99 = sphi 0, %s99
      %s101 = sphi 0, %s99
      %s102 = sphi 0, %s101
      %s116 = sphi 0, %s102
      %s120 = sphi 0, %s120
      %s122 = sphi 0, %s120
      %s123 = sphi 0, %s122
      %s137 = sphi 0, %s123
      %s143 = sphi 0, %s145
      %s146 = sphi 0, %s143
      %s147 = sphi 0, %s146
      %s163 = sphi 0, %s147
      %s169 = sphi 0, %s171
      %s172 = sphi 0, %s169
      %s173 = sphi 0, %s172
      %s189 = sphi 0, %s173
    $region4: #{_lambda_.1} parent=1 // loop_header_branch
      %26 = sbr.rel (%p24) target = $region8
    $region5: #{_lambda_.1} parent=1 // loop_body
      %s28 = ssub.s32 %s23, 1
      %s29 = ssub.s32 %s23, 2
      %s30 = sadd.s32 %s23, 1
      %s31 = ssub.s32 %s23, %s30
      %p32 = scmp.eq.s32.totalorder %s31, 0
      %s34 = sadd.s32 %s33, 1
      %s35 = scalar_select %p32, %s33, %s34
      %p38 = pneg %p32
      %p39 = scmp.eq.s32.totalorder %s23, 1
      %p40 = por %p38, %p39
      %p41 = scmp.ne.s32.totalorder %s33, %s36
      %p42 = scmp.eq.s32.totalorder %s23, 0
      %p43 = por %p41, %p42
      %p44 = scmp.ne.s32.totalorder %s33, %s36
      %p45 = scmp.eq.s32.totalorder %s28, 1
      %p46 = por %p44, %p45
      %p47 = scmp.ne.s32.totalorder %s36, %s37
      %p48 = scmp.eq.s32.totalorder %s28, 0
      %p49 = por %p47, %p48
      %p50 = scmp.ne.s32.totalorder %s36, %s37
      %p51 = scmp.eq.s32.totalorder %s29, 1
      %p52 = por %p50, %p51
      %p54 = scmp.ne.s32.totalorder %s37, %s53
      %p55 = scmp.eq.s32.totalorder %s29, 0
      %p56 = por %p54, %p55
      %s58 = sadd.s32 %s57, 1
      %p61 = scmp.eq.s32.totalorder %s23, 1
      %p62 = scmp.ne.s32.totalorder %s57, %s59
      %p63 = scmp.eq.s32.totalorder %s23, 0
      %p64 = por %p62, %p63
      %p65 = scmp.ne.s32.totalorder %s57, %s59
      %p66 = scmp.eq.s32.totalorder %s28, 1
      %p67 = por %p65, %p66
      %p68 = scmp.ne.s32.totalorder %s59, %s60
      %p69 = scmp.eq.s32.totalorder %s28, 0
      %p70 = por %p68, %p69
      %p71 = scmp.ne.s32.totalorder %s59, %s60
      %p72 = scmp.eq.s32.totalorder %s29, 1
      %p73 = por %p71, %p72
      %p75 = scmp.ne.s32.totalorder %s60, %s74
      %p76 = scmp.eq.s32.totalorder %s29, 0
      %p77 = por %p75, %p76
      %s79 = sadd.s32 %s78, 1
      %p82 = scmp.eq.s32.totalorder %s23, 1
      %p83 = scmp.ne.s32.totalorder %s78, %s80
      %p84 = scmp.eq.s32.totalorder %s23, 0
      %p85 = por %p83, %p84
      %p86 = scmp.ne.s32.totalorder %s78, %s80
      %p87 = scmp.eq.s32.totalorder %s28, 1
      %p88 = por %p86, %p87
      %p89 = scmp.ne.s32.totalorder %s80, %s81
      %p90 = scmp.eq.s32.totalorder %s28, 0
      %p91 = por %p89, %p90
      %p92 = scmp.ne.s32.totalorder %s80, %s81
      %p93 = scmp.eq.s32.totalorder %s29, 1
      %p94 = por %p92, %p93
      %p96 = scmp.ne.s32.totalorder %s81, %s95
      %p97 = scmp.eq.s32.totalorder %s29, 0
      %p98 = por %p96, %p97
      %s100 = sadd.s32 %s99, 1
      %p103 = scmp.eq.s32.totalorder %s23, 1
      %p104 = scmp.ne.s32.totalorder %s99, %s101
      %p105 = scmp.eq.s32.totalorder %s23, 0
      %p106 = por %p104, %p105
      %p107 = scmp.ne.s32.totalorder %s99, %s101
      %p108 = scmp.eq.s32.totalorder %s28, 1
      %p109 = por %p107, %p108
      %p110 = scmp.ne.s32.totalorder %s101, %s102
      %p111 = scmp.eq.s32.totalorder %s28, 0
      %p112 = por %p110, %p111
      %p113 = scmp.ne.s32.totalorder %s101, %s102
      %p114 = scmp.eq.s32.totalorder %s29, 1
      %p115 = por %p113, %p114
      %p117 = scmp.ne.s32.totalorder %s102, %s116
      %p118 = scmp.eq.s32.totalorder %s29, 0
      %p119 = por %p117, %p118
      %s121 = sadd.s32 %s120, 1
      %p124 = scmp.eq.s32.totalorder %s23, 1
      %p125 = scmp.ne.s32.totalorder %s120, %s122
      %p126 = scmp.eq.s32.totalorder %s23, 0
      %p127 = por %p125, %p126
      %p128 = scmp.ne.s32.totalorder %s120, %s122
      %p129 = scmp.eq.s32.totalorder %s28, 1
      %p130 = por %p128, %p129
      %p131 = scmp.ne.s32.totalorder %s122, %s123
      %p132 = scmp.eq.s32.totalorder %s28, 0
      %p133 = por %p131, %p132
      %p134 = scmp.ne.s32.totalorder %s122, %s123
      %p135 = scmp.eq.s32.totalorder %s29, 1
      %p136 = por %p134, %p135
      %p138 = scmp.ne.s32.totalorder %s123, %s137
      %p139 = scmp.eq.s32.totalorder %s29, 0
      %p140 = por %p138, %p139
      %s141 = ssub.s32 %s23, %s30
      %p142 = scmp.eq.s32.totalorder %s141, 0
      %s144 = sadd.s32 %s143, 1
      %s145 = scalar_select %p142, %s143, %s144
      %p148 = pneg %p142
      %p149 = scmp.eq.s32.totalorder %s23, 1
      %p150 = por %p148, %p149
      %p151 = scmp.ne.s32.totalorder %s143, %s146
      %p152 = scmp.eq.s32.totalorder %s23, 0
      %p153 = por %p151, %p152
      %p154 = scmp.ne.s32.totalorder %s143, %s146
      %p155 = scmp.eq.s32.totalorder %s28, 1
      %p156 = por %p154, %p155
      %p157 = scmp.ne.s32.totalorder %s146, %s147
      %p158 = scmp.eq.s32.totalorder %s28, 0
      %p159 = por %p157, %p158
      %p160 = scmp.ne.s32.totalorder %s146, %s147
      %p161 = scmp.eq.s32.totalorder %s29, 1
      %p162 = por %p160, %p161
      %p164 = scmp.ne.s32.totalorder %s147, %s163
      %p165 = scmp.eq.s32.totalorder %s29, 0
      %p166 = por %p164, %p165
      %s167 = ssub.s32 %s23, %s30
      %p168 = scmp.eq.s32.totalorder %s167, 0
      %s170 = sadd.s32 %s169, 1
      %s171 = scalar_select %p168, %s169, %s170
      %p174 = pneg %p168
      %p175 = scmp.eq.s32.totalorder %s23, 1
      %p176 = por %p174, %p175
      %p177 = scmp.ne.s32.totalorder %s169, %s172
      %p178 = scmp.eq.s32.totalorder %s23, 0
      %p179 = por %p177, %p178
      %p180 = scmp.ne.s32.totalorder %s169, %s172
      %p181 = scmp.eq.s32.totalorder %s28, 1
      %p182 = por %p180, %p181
      %p183 = scmp.ne.s32.totalorder %s172, %s173
      %p184 = scmp.eq.s32.totalorder %s28, 0
      %p185 = por %p183, %p184
      %p186 = scmp.ne.s32.totalorder %s172, %s173
      %p187 = scmp.eq.s32.totalorder %s29, 1
      %p188 = por %p186, %p187
      %p190 = scmp.ne.s32.totalorder %s173, %s189
      %p191 = scmp.eq.s32.totalorder %s29, 0
      %p192 = por %p190, %p191
      %p193 = scmp.le.s32.totalorder 1, %s23
      %p194 = scmp.lt.s32.totalorder %s23, 3
      %p195 = pnand %p193, %p194
      %p196 = pneg %p195
      // Predicated region
      $region9: #{_lambda_.1} parent=5 // pred_check
        _
      $region10: #{_lambda_.1} parent=5 // pred_check_branch
        %198 = sbr.rel (%p195) target = $region12
      $region11: #{_lambda_.1} parent=5 // pred_region
        %s199 = ssub.s32 %s23, 1
        // Predicated region
        $region13: #{_lambda_.1} parent=11 // pred_check
          %p200 = pneg %p70
        $region14: #{_lambda_.1} parent=11 // pred_check_branch
          %202 = sbr.rel (%p200) target = $region16
        $region15: #{_lambda_.1} parent=11 // pred_region
          %204 = vsyncadd [#allocation6], 0
          %s205 = sshll.u32 %s1, 4
          %s206 = int_to_ptr.hbm [resolvable:$true] %s205
          %s207 = sshll.u32 [#allocation5], 4
          %s208 = int_to_ptr.vmem [resolvable:$true] %s207
          %213 = dma.hbm_to_vmem [thread:$0]  %s206, 4096, %s208, [#allocation6], 128, 128, 8
        $region16: #{_lambda_.1} parent=11 // pred_fallthru
          _
        // Predicated region
        $region17: #{_lambda_.1} parent=11 // pred_check
          %p214 = pneg %p91
        $region18: #{_lambda_.1} parent=11 // pred_check_branch
          %216 = sbr.rel (%p214) target = $region20
        $region19: #{_lambda_.1} parent=11 // pred_region
          _
        $region20: #{_lambda_.1} parent=11 // pred_fallthru
          _
        // Predicated region
        $region21: #{_lambda_.1} parent=11 // pred_check
          %p217 = pneg %p112
        $region22: #{_lambda_.1} parent=11 // pred_check_branch
          %219 = sbr.rel (%p217) target = $region24
        $region23: #{_lambda_.1} parent=11 // pred_region
          %221 = vsyncadd [#allocation6], 0
          %s222 = sshll.u32 %s3, 4
          %s223 = int_to_ptr.hbm [resolvable:$true] %s222
          %s224 = sshll.u32 [#allocation7], 4
          %s225 = int_to_ptr.vmem [resolvable:$true] %s224
          %230 = dma.hbm_to_vmem [thread:$0]  %s223, 4096, %s225, [#allocation6], 256, 256, 16
        $region24: #{_lambda_.1} parent=11 // pred_fallthru
          _
        // Predicated region
        $region25: #{_lambda_.1} parent=11 // pred_check
          %p231 = pneg %p133
        $region26: #{_lambda_.1} parent=11 // pred_check_branch
          %233 = sbr.rel (%p231) target = $region28
        $region27: #{_lambda_.1} parent=11 // pred_region
          _
        $region28: #{_lambda_.1} parent=11 // pred_fallthru
          _
      $region12: #{_lambda_.1} parent=5 // pred_fallthru
        _
      %p234 = scmp.lt.s32.totalorder %s23, 2
      // Predicated region
      $region29: #{_lambda_.1} parent=5 // pred_check
        %p235 = pneg %p234
      $region30: #{_lambda_.1} parent=5 // pred_check_branch
        %237 = sbr.rel (%p235) target = $region32
      $region31: #{_lambda_.1} parent=5 // pred_region
        // Predicated region
        $region33: #{_lambda_.1} parent=31 // pred_check
          %p238 = pneg %p43
        $region34: #{_lambda_.1} parent=31 // pred_check_branch
          %240 = sbr.rel (%p238) target = $region36
        $region35: #{_lambda_.1} parent=31 // pred_region
          %s241 = sand.u32 %s33, 1
          %s242 = scalar_lea.sflag [#allocation3], %s241
          %s243 = sand.u32 %s33, 1
          %s244 = smul.addr %s243, 512
          %s245 = scalar_lea.vmem [#allocation2], %s244
          %s246 = smul.u32 32, %s23
          %248 = vsyncadd %s242, 0
          %s249 = smul.addr %s246, 2
          %s250 = smul.addr %s249, 8
          %s251 = scalar_lea.hbm %s0, %s250
          %s252 = sshll.u32 %s251, 4
          %s253 = int_to_ptr.hbm [resolvable:$true] %s252
          %s254 = sshll.u32 %s245, 4
          %s255 = int_to_ptr.vmem [resolvable:$true] %s254
          %260 = dma.hbm_to_vmem [thread:$0]  %s253, 8192, %s255, %s242, 256, 256, 16
        $region36: #{_lambda_.1} parent=31 // pred_fallthru
          _
      $region32: #{_lambda_.1} parent=5 // pred_fallthru
        _
      %p261 = scmp.le.s32.totalorder 1, %s23
      %p262 = scmp.lt.s32.totalorder %s23, 3
      %p263 = pnand %p261, %p262
      %p264 = pneg %p263
      // Predicated region
      $region37: #{_lambda_.1} parent=5 // pred_check
        _
      $region38: #{_lambda_.1} parent=5 // pred_check_branch
        %266 = sbr.rel (%p263) target = $region40
      $region39: #{_lambda_.1} parent=5 // pred_region
        %s267 = ssub.s32 %s23, 1
        %s268 = sand.u32 %s36, 1
        %s269 = scalar_lea.sflag [#allocation3], %s268
        %s270 = sand.u32 %s36, 1
        %s271 = smul.addr %s270, 512
        %s272 = scalar_lea.vmem [#allocation2], %s271
        // Predicated region
        $region41: #{_lambda_.1} parent=39 // pred_check
          %p273 = pneg %p49
        $region42: #{_lambda_.1} parent=39 // pred_check_branch
          %275 = sbr.rel (%p273) target = $region44
        $region43: #{_lambda_.1} parent=39 // pred_region
          %277 = dma.done %s269, 8192
        $region44: #{_lambda_.1} parent=39 // pred_fallthru
          _
        // Predicated region
        $region45: #{_lambda_.1} parent=39 // pred_check
          %p278 = pneg %p70
        $region46: #{_lambda_.1} parent=39 // pred_check_branch
          %280 = sbr.rel (%p278) target = $region48
        $region47: #{_lambda_.1} parent=39 // pred_region
          %282 = dma.done [#allocation6], 4096
        $region48: #{_lambda_.1} parent=39 // pred_fallthru
          _
        // Predicated region
        $region49: #{_lambda_.1} parent=39 // pred_check
          %p283 = pneg %p112
        $region50: #{_lambda_.1} parent=39 // pred_check_branch
          %285 = sbr.rel (%p283) target = $region52
        $region51: #{_lambda_.1} parent=39 // pred_region
          %287 = dma.done [#allocation6], 4096
        $region52: #{_lambda_.1} parent=39 // pred_fallthru
          _
        %s288 = sand.u32 %s36, 1
        %s289 = scalar_lea.sflag [#allocation3], %s288
        %s290 = sand.u32 %s36, 1
        %s291 = smul.addr %s290, 512
        %s292 = scalar_lea.vmem [#allocation2], %s291
        %p293 = pneg %p49
        %p294 = pneg %p46
        %p295 = pneg %p70
        %p296 = pneg %p67
        %p297 = pneg %p91
        %p298 = pneg %p88
        %p299 = pneg %p112
        %p300 = pneg %p109
        %p301 = pneg %p133
        %p302 = pneg %p130
        %p303 = pneg %p159
        %p304 = pneg %p156
        %s305 = sand.u32 %s146, 1
        %s306 = scalar_lea.sflag [#allocation4], %s305
        %s307 = sand.u32 %s146, 1
        %s308 = smul.addr %s307, 256
        %s309 = scalar_lea.vmem [#allocation8], %s308
        %p310 = pneg %p185
        %p311 = pneg %p182
        %s312 = sand.u32 %s172, 1
        %s313 = scalar_lea.sflag [#allocation10], %s312
        %s314 = sand.u32 %s172, 1
        %s315 = smul.addr %s314, 512
        %s316 = scalar_lea.vmem [#allocation9], %s315
        %s317 = smul.u32 32, %s28
        %s318 = smul.u32 32, %s28
        %s319 = smul.u32 32, %s28
        %v320 = vld [vmem:[%s272] sm:$0xff]
        %v321 = vld [vmem:[%s272 + $0x8] sm:$0xff]
        %v322 = vld [vmem:[%s272 + $0x10] sm:$0xff]
        %v323 = vld [vmem:[%s272 + $0x18] sm:$0xff]
        %v324 = vld [vmem:[%s272 + $0x20] sm:$0xff]
        %v325 = vld [vmem:[%s272 + $0x28] sm:$0xff]
        %v326 = vld [vmem:[%s272 + $0x30] sm:$0xff]
        %v327 = vld [vmem:[%s272 + $0x38] sm:$0xff]
        %v328 = vld [vmem:[%s272 + $0x40] sm:$0xff]
        %v329 = vld [vmem:[%s272 + $0x48] sm:$0xff]
        %v330 = vld [vmem:[%s272 + $0x50] sm:$0xff]
        %v331 = vld [vmem:[%s272 + $0x58] sm:$0xff]
        %v332 = vld [vmem:[%s272 + $0x60] sm:$0xff]
        %v333 = vld [vmem:[%s272 + $0x68] sm:$0xff]
        %v334 = vld [vmem:[%s272 + $0x70] sm:$0xff]
        %v335 = vld [vmem:[%s272 + $0x78] sm:$0xff]
        %v336 = vld [vmem:[%s272 + $0x80] sm:$0xff]
        %v337 = vld [vmem:[%s272 + $0x88] sm:$0xff]
        %v338 = vld [vmem:[%s272 + $0x90] sm:$0xff]
        %v339 = vld [vmem:[%s272 + $0x98] sm:$0xff]
        %v340 = vld [vmem:[%s272 + $0xa0] sm:$0xff]
        %v341 = vld [vmem:[%s272 + $0xa8] sm:$0xff]
        %v342 = vld [vmem:[%s272 + $0xb0] sm:$0xff]
        %v343 = vld [vmem:[%s272 + $0xb8] sm:$0xff]
        %v344 = vld [vmem:[%s272 + $0xc0] sm:$0xff]
        %v345 = vld [vmem:[%s272 + $0xc8] sm:$0xff]
        %v346 = vld [vmem:[%s272 + $0xd0] sm:$0xff]
        %v347 = vld [vmem:[%s272 + $0xd8] sm:$0xff]
        %v348 = vld [vmem:[%s272 + $0xe0] sm:$0xff]
        %v349 = vld [vmem:[%s272 + $0xe8] sm:$0xff]
        %v350 = vld [vmem:[%s272 + $0xf0] sm:$0xff]
        %v351 = vld [vmem:[%s272 + $0xf8] sm:$0xff]
        %v352 = vld [vmem:[%s272 + $0x100] sm:$0xff]
        %v353 = vld [vmem:[%s272 + $0x108] sm:$0xff]
        %v354 = vld [vmem:[%s272 + $0x110] sm:$0xff]
        %v355 = vld [vmem:[%s272 + $0x118] sm:$0xff]
        %v356 = vld [vmem:[%s272 + $0x120] sm:$0xff]
        %v357 = vld [vmem:[%s272 + $0x128] sm:$0xff]
        %v358 = vld [vmem:[%s272 + $0x130] sm:$0xff]
        %v359 = vld [vmem:[%s272 + $0x138] sm:$0xff]
        %v360 = vld [vmem:[%s272 + $0x140] sm:$0xff]
        %v361 = vld [vmem:[%s272 + $0x148] sm:$0xff]
        %v362 = vld [vmem:[%s272 + $0x150] sm:$0xff]
        %v363 = vld [vmem:[%s272 + $0x158] sm:$0xff]
        %v364 = vld [vmem:[%s272 + $0x160] sm:$0xff]
        %v365 = vld [vmem:[%s272 + $0x168] sm:$0xff]
        %v366 = vld [vmem:[%s272 + $0x170] sm:$0xff]
        %v367 = vld [vmem:[%s272 + $0x178] sm:$0xff]
        %v368 = vld [vmem:[%s272 + $0x180] sm:$0xff]
        %v369 = vld [vmem:[%s272 + $0x188] sm:$0xff]
        %v370 = vld [vmem:[%s272 + $0x190] sm:$0xff]
        %v371 = vld [vmem:[%s272 + $0x198] sm:$0xff]
        %v372 = vld [vmem:[%s272 + $0x1a0] sm:$0xff]
        %v373 = vld [vmem:[%s272 + $0x1a8] sm:$0xff]
        %v374 = vld [vmem:[%s272 + $0x1b0] sm:$0xff]
        %v375 = vld [vmem:[%s272 + $0x1b8] sm:$0xff]
        %v376 = vld [vmem:[%s272 + $0x1c0] sm:$0xff]
        %v377 = vld [vmem:[%s272 + $0x1c8] sm:$0xff]
        %v378 = vld [vmem:[%s272 + $0x1d0] sm:$0xff]
        %v379 = vld [vmem:[%s272 + $0x1d8] sm:$0xff]
        %v380 = vld [vmem:[%s272 + $0x1e0] sm:$0xff]
        %v381 = vld [vmem:[%s272 + $0x1e8] sm:$0xff]
        %v382 = vld [vmem:[%s272 + $0x1f0] sm:$0xff]
        %v383 = vld [vmem:[%s272 + $0x1f8] sm:$0xff]
        %v384 = vld [vmem:[#allocation5] sm:$0xff]
        %v385 = vld [vmem:[#allocation5 + $0x8] sm:$0xff]
        %v386 = vld [vmem:[#allocation5 + $0x10] sm:$0xff]
        %v387 = vld [vmem:[#allocation5 + $0x18] sm:$0xff]
        %v388 = vld [vmem:[#allocation5 + $0x20] sm:$0xff]
        %v389 = vld [vmem:[#allocation5 + $0x28] sm:$0xff]
        %v390 = vld [vmem:[#allocation5 + $0x30] sm:$0xff]
        %v391 = vld [vmem:[#allocation5 + $0x38] sm:$0xff]
        %v392 = vld [vmem:[#allocation5 + $0x40] sm:$0xff]
        %v393 = vld [vmem:[#allocation5 + $0x48] sm:$0xff]
        %v394 = vld [vmem:[#allocation5 + $0x50] sm:$0xff]
        %v395 = vld [vmem:[#allocation5 + $0x58] sm:$0xff]
        %v396 = vld [vmem:[#allocation5 + $0x60] sm:$0xff]
        %v397 = vld [vmem:[#allocation5 + $0x68] sm:$0xff]
        %v398 = vld [vmem:[#allocation5 + $0x70] sm:$0xff]
        %v399 = vld [vmem:[#allocation5 + $0x78] sm:$0xff]
        %v400 = vld [vmem:[#allocation5 + $0x80] sm:$0xff]
        %v401 = vld [vmem:[#allocation5 + $0x88] sm:$0xff]
        %v402 = vld [vmem:[#allocation5 + $0x90] sm:$0xff]
        %v403 = vld [vmem:[#allocation5 + $0x98] sm:$0xff]
        %v404 = vld [vmem:[#allocation5 + $0xa0] sm:$0xff]
        %v405 = vld [vmem:[#allocation5 + $0xa8] sm:$0xff]
        %v406 = vld [vmem:[#allocation5 + $0xb0] sm:$0xff]
        %v407 = vld [vmem:[#allocation5 + $0xb8] sm:$0xff]
        %v408 = vld [vmem:[#allocation5 + $0xc0] sm:$0xff]
        %v409 = vld [vmem:[#allocation5 + $0xc8] sm:$0xff]
        %v410 = vld [vmem:[#allocation5 + $0xd0] sm:$0xff]
        %v411 = vld [vmem:[#allocation5 + $0xd8] sm:$0xff]
        %v412 = vld [vmem:[#allocation5 + $0xe0] sm:$0xff]
        %v413 = vld [vmem:[#allocation5 + $0xe8] sm:$0xff]
        %v414 = vld [vmem:[#allocation5 + $0xf0] sm:$0xff]
        %v415 = vld [vmem:[#allocation5 + $0xf8] sm:$0xff]
        %v416 = vld [vmem:[%s2] sm:$0x1]
        %v418 = vperm.slane %v416, 0
        %420 = vmatpush.msra.mxu0 %v399
        %421 = vmatpush.msra.mxu0 %v398
        %422 = vmatpush.msra.mxu0 %v397
        %423 = vmatpush.msra.mxu0 %v396
        %424 = vmatpush.msra.mxu0 %v395
        %425 = vmatpush.msra.mxu0 %v394
        %426 = vmatpush.msra.mxu0 %v393
        %427 = vmatpush.msra.mxu0 %v392
        %428 = vmatpush.msra.mxu0 %v391
        %429 = vmatpush.msra.mxu0 %v390
        %430 = vmatpush.msra.mxu0 %v389
        %431 = vmatpush.msra.mxu0 %v388
        %432 = vmatpush.msra.mxu0 %v387
        %433 = vmatpush.msra.mxu0 %v386
        %434 = vmatpush.msra.mxu0 %v385
        %435 = vmatpush.msra.mxu0 %v384
        %436 = vmatmul.f32.gmra.mxu0 %v320
        %v437 = vpop.f32.mrf.mxu0
        %v438 = vadd.f32 %v418, %v437
        %439 = vmatmul.f32.gmra.mxu0 %v322
        %v440 = vpop.f32.mrf.mxu0
        %v441 = vadd.f32 %v418, %v440
        %442 = vmatmul.f32.gmra.mxu0 %v324
        %v443 = vpop.f32.mrf.mxu0
        %v444 = vadd.f32 %v418, %v443
        %445 = vmatmul.f32.gmra.mxu0 %v326
        %v446 = vpop.f32.mrf.mxu0
        %v447 = vadd.f32 %v418, %v446
        %448 = vmatmul.f32.gmra.mxu0 %v328
        %v449 = vpop.f32.mrf.mxu0
        %v450 = vadd.f32 %v418, %v449
        %451 = vmatmul.f32.gmra.mxu0 %v330
        %v452 = vpop.f32.mrf.mxu0
        %v453 = vadd.f32 %v418, %v452
        %454 = vmatmul.f32.gmra.mxu0 %v332
        %v455 = vpop.f32.mrf.mxu0
        %v456 = vadd.f32 %v418, %v455
        %457 = vmatmul.f32.gmra.mxu0 %v334
        %v458 = vpop.f32.mrf.mxu0
        %v459 = vadd.f32 %v418, %v458
        %460 = vmatmul.f32.gmra.mxu0 %v336
        %v461 = vpop.f32.mrf.mxu0
        %v462 = vadd.f32 %v418, %v461
        %463 = vmatmul.f32.gmra.mxu0 %v338
        %v464 = vpop.f32.mrf.mxu0
        %v465 = vadd.f32 %v418, %v464
        %466 = vmatmul.f32.gmra.mxu0 %v340
        %v467 = vpop.f32.mrf.mxu0
        %v468 = vadd.f32 %v418, %v467
        %469 = vmatmul.f32.gmra.mxu0 %v342
        %v470 = vpop.f32.mrf.mxu0
        %v471 = vadd.f32 %v418, %v470
        %472 = vmatmul.f32.gmra.mxu0 %v344
        %v473 = vpop.f32.mrf.mxu0
        %v474 = vadd.f32 %v418, %v473
        %475 = vmatmul.f32.gmra.mxu0 %v346
        %v476 = vpop.f32.mrf.mxu0
        %v477 = vadd.f32 %v418, %v476
        %478 = vmatmul.f32.gmra.mxu0 %v348
        %v479 = vpop.f32.mrf.mxu0
        %v480 = vadd.f32 %v418, %v479
        %481 = vmatmul.f32.gmra.mxu0 %v350
        %v482 = vpop.f32.mrf.mxu0
        %v483 = vadd.f32 %v418, %v482
        %484 = vmatmul.f32.gmra.mxu0 %v352
        %v485 = vpop.f32.mrf.mxu0
        %v486 = vadd.f32 %v418, %v485
        %487 = vmatmul.f32.gmra.mxu0 %v354
        %v488 = vpop.f32.mrf.mxu0
        %v489 = vadd.f32 %v418, %v488
        %490 = vmatmul.f32.gmra.mxu0 %v356
        %v491 = vpop.f32.mrf.mxu0
        %v492 = vadd.f32 %v418, %v491
        %493 = vmatmul.f32.gmra.mxu0 %v358
        %v494 = vpop.f32.mrf.mxu0
        %v495 = vadd.f32 %v418, %v494
        %496 = vmatmul.f32.gmra.mxu0 %v360
        %v497 = vpop.f32.mrf.mxu0
        %v498 = vadd.f32 %v418, %v497
        %499 = vmatmul.f32.gmra.mxu0 %v362
        %v500 = vpop.f32.mrf.mxu0
        %v501 = vadd.f32 %v418, %v500
        %502 = vmatmul.f32.gmra.mxu0 %v364
        %v503 = vpop.f32.mrf.mxu0
        %v504 = vadd.f32 %v418, %v503
        %505 = vmatmul.f32.gmra.mxu0 %v366
        %v506 = vpop.f32.mrf.mxu0
        %v507 = vadd.f32 %v418, %v506
        %508 = vmatmul.f32.gmra.mxu0 %v368
        %v509 = vpop.f32.mrf.mxu0
        %v510 = vadd.f32 %v418, %v509
        %511 = vmatmul.f32.gmra.mxu0 %v370
        %v512 = vpop.f32.mrf.mxu0
        %v513 = vadd.f32 %v418, %v512
        %514 = vmatmul.f32.gmra.mxu0 %v372
        %v515 = vpop.f32.mrf.mxu0
        %v516 = vadd.f32 %v418, %v515
        %517 = vmatmul.f32.gmra.mxu0 %v374
        %v518 = vpop.f32.mrf.mxu0
        %v519 = vadd.f32 %v418, %v518
        %520 = vmatmul.f32.gmra.mxu0 %v376
        %v521 = vpop.f32.mrf.mxu0
        %v522 = vadd.f32 %v418, %v521
        %523 = vmatmul.f32.gmra.mxu0 %v378
        %v524 = vpop.f32.mrf.mxu0
        %v525 = vadd.f32 %v418, %v524
        %526 = vmatmul.f32.gmra.mxu0 %v380
        %v527 = vpop.f32.mrf.mxu0
        %v528 = vadd.f32 %v418, %v527
        %529 = vmatmul.f32.gmra.mxu0 %v382
        %v530 = vpop.f32.mrf.mxu0
        %v531 = vadd.f32 %v418, %v530
        %532 = vdwg.mxu0
        %533 = vmatpush.msra.mxu0 %v415
        %534 = vmatpush.msra.mxu0 %v414
        %535 = vmatpush.msra.mxu0 %v413
        %536 = vmatpush.msra.mxu0 %v412
        %537 = vmatpush.msra.mxu0 %v411
        %538 = vmatpush.msra.mxu0 %v410
        %539 = vmatpush.msra.mxu0 %v409
        %540 = vmatpush.msra.mxu0 %v408
        %541 = vmatpush.msra.mxu0 %v407
        %542 = vmatpush.msra.mxu0 %v406
        %543 = vmatpush.msra.mxu0 %v405
        %544 = vmatpush.msra.mxu0 %v404
        %545 = vmatpush.msra.mxu0 %v403
        %546 = vmatpush.msra.mxu0 %v402
        %547 = vmatpush.msra.mxu0 %v401
        %548 = vmatpush.msra.mxu0 %v400
        %549 = vmatmul.f32.gmra.mxu0 %v321
        %v550 = vpop.f32.mrf.mxu0
        %v551 = vadd.f32 %v438, %v550
        %552 = vmatmul.f32.gmra.mxu0 %v323
        %v553 = vpop.f32.mrf.mxu0
        %v554 = vadd.f32 %v441, %v553
        %555 = vmatmul.f32.gmra.mxu0 %v325
        %v556 = vpop.f32.mrf.mxu0
        %v557 = vadd.f32 %v444, %v556
        %558 = vmatmul.f32.gmra.mxu0 %v327
        %v559 = vpop.f32.mrf.mxu0
        %v560 = vadd.f32 %v447, %v559
        %561 = vmatmul.f32.gmra.mxu0 %v329
        %v562 = vpop.f32.mrf.mxu0
        %v563 = vadd.f32 %v450, %v562
        %564 = vmatmul.f32.gmra.mxu0 %v331
        %v565 = vpop.f32.mrf.mxu0
        %v566 = vadd.f32 %v453, %v565
        %567 = vmatmul.f32.gmra.mxu0 %v333
        %v568 = vpop.f32.mrf.mxu0
        %v569 = vadd.f32 %v456, %v568
        %570 = vmatmul.f32.gmra.mxu0 %v335
        %v571 = vpop.f32.mrf.mxu0
        %v572 = vadd.f32 %v459, %v571
        %573 = vmatmul.f32.gmra.mxu0 %v337
        %v574 = vpop.f32.mrf.mxu0
        %v575 = vadd.f32 %v462, %v574
        %576 = vmatmul.f32.gmra.mxu0 %v339
        %v577 = vpop.f32.mrf.mxu0
        %v578 = vadd.f32 %v465, %v577
        %579 = vmatmul.f32.gmra.mxu0 %v341
        %v580 = vpop.f32.mrf.mxu0
        %v581 = vadd.f32 %v468, %v580
        %582 = vmatmul.f32.gmra.mxu0 %v343
        %v583 = vpop.f32.mrf.mxu0
        %v584 = vadd.f32 %v471, %v583
        %585 = vmatmul.f32.gmra.mxu0 %v345
        %v586 = vpop.f32.mrf.mxu0
        %v587 = vadd.f32 %v474, %v586
        %588 = vmatmul.f32.gmra.mxu0 %v347
        %v589 = vpop.f32.mrf.mxu0
        %v590 = vadd.f32 %v477, %v589
        %591 = vmatmul.f32.gmra.mxu0 %v349
        %v592 = vpop.f32.mrf.mxu0
        %v593 = vadd.f32 %v480, %v592
        %594 = vmatmul.f32.gmra.mxu0 %v351
        %v595 = vpop.f32.mrf.mxu0
        %v596 = vadd.f32 %v483, %v595
        %597 = vmatmul.f32.gmra.mxu0 %v353
        %v598 = vpop.f32.mrf.mxu0
        %v599 = vadd.f32 %v486, %v598
        %600 = vmatmul.f32.gmra.mxu0 %v355
        %v601 = vpop.f32.mrf.mxu0
        %v602 = vadd.f32 %v489, %v601
        %603 = vmatmul.f32.gmra.mxu0 %v357
        %v604 = vpop.f32.mrf.mxu0
        %v605 = vadd.f32 %v492, %v604
        %606 = vmatmul.f32.gmra.mxu0 %v359
        %v607 = vpop.f32.mrf.mxu0
        %v608 = vadd.f32 %v495, %v607
        %609 = vmatmul.f32.gmra.mxu0 %v361
        %v610 = vpop.f32.mrf.mxu0
        %v611 = vadd.f32 %v498, %v610
        %612 = vmatmul.f32.gmra.mxu0 %v363
        %v613 = vpop.f32.mrf.mxu0
        %v614 = vadd.f32 %v501, %v613
        %615 = vmatmul.f32.gmra.mxu0 %v365
        %v616 = vpop.f32.mrf.mxu0
        %v617 = vadd.f32 %v504, %v616
        %618 = vmatmul.f32.gmra.mxu0 %v367
        %v619 = vpop.f32.mrf.mxu0
        %v620 = vadd.f32 %v507, %v619
        %621 = vmatmul.f32.gmra.mxu0 %v369
        %v622 = vpop.f32.mrf.mxu0
        %v623 = vadd.f32 %v510, %v622
        %624 = vmatmul.f32.gmra.mxu0 %v371
        %v625 = vpop.f32.mrf.mxu0
        %v626 = vadd.f32 %v513, %v625
        %627 = vmatmul.f32.gmra.mxu0 %v373
        %v628 = vpop.f32.mrf.mxu0
        %v629 = vadd.f32 %v516, %v628
        %630 = vmatmul.f32.gmra.mxu0 %v375
        %v631 = vpop.f32.mrf.mxu0
        %v632 = vadd.f32 %v519, %v631
        %633 = vmatmul.f32.gmra.mxu0 %v377
        %v634 = vpop.f32.mrf.mxu0
        %v635 = vadd.f32 %v522, %v634
        %636 = vmatmul.f32.gmra.mxu0 %v379
        %v637 = vpop.f32.mrf.mxu0
        %v638 = vadd.f32 %v525, %v637
        %639 = vmatmul.f32.gmra.mxu0 %v381
        %v640 = vpop.f32.mrf.mxu0
        %v641 = vadd.f32 %v528, %v640
        %642 = vmatmul.f32.gmra.mxu0 %v383
        %v643 = vpop.f32.mrf.mxu0
        %v644 = vadd.f32 %v531, %v643
        %645 = vdwg.mxu0
        %v646 = vmax.f32 %v551, 0.0
        %v647 = vmax.f32 %v554, 0.0
        %v648 = vmax.f32 %v557, 0.0
        %v649 = vmax.f32 %v560, 0.0
        %v650 = vmax.f32 %v563, 0.0
        %v651 = vmax.f32 %v566, 0.0
        %v652 = vmax.f32 %v569, 0.0
        %v653 = vmax.f32 %v572, 0.0
        %v654 = vmax.f32 %v575, 0.0
        %v655 = vmax.f32 %v578, 0.0
        %v656 = vmax.f32 %v581, 0.0
        %v657 = vmax.f32 %v584, 0.0
        %v658 = vmax.f32 %v587, 0.0
        %v659 = vmax.f32 %v590, 0.0
        %v660 = vmax.f32 %v593, 0.0
        %v661 = vmax.f32 %v596, 0.0
        %v662 = vmax.f32 %v599, 0.0
        %v663 = vmax.f32 %v602, 0.0
        %v664 = vmax.f32 %v605, 0.0
        %v665 = vmax.f32 %v608, 0.0
        %v666 = vmax.f32 %v611, 0.0
        %v667 = vmax.f32 %v614, 0.0
        %v668 = vmax.f32 %v617, 0.0
        %v669 = vmax.f32 %v620, 0.0
        %v670 = vmax.f32 %v623, 0.0
        %v671 = vmax.f32 %v626, 0.0
        %v672 = vmax.f32 %v629, 0.0
        %v673 = vmax.f32 %v632, 0.0
        %v674 = vmax.f32 %v635, 0.0
        %v675 = vmax.f32 %v638, 0.0
        %v676 = vmax.f32 %v641, 0.0
        %v677 = vmax.f32 %v644, 0.0
        %678 = vst [vmem:[%s309] sm:$0xff] %v646
        %679 = vst [vmem:[%s309 + $0x8] sm:$0xff] %v647
        %680 = vst [vmem:[%s309 + $0x10] sm:$0xff] %v648
        %681 = vst [vmem:[%s309 + $0x18] sm:$0xff] %v649
        %682 = vst [vmem:[%s309 + $0x20] sm:$0xff] %v650
        %683 = vst [vmem:[%s309 + $0x28] sm:$0xff] %v651
        %684 = vst [vmem:[%s309 + $0x30] sm:$0xff] %v652
        %685 = vst [vmem:[%s309 + $0x38] sm:$0xff] %v653
        %686 = vst [vmem:[%s309 + $0x40] sm:$0xff] %v654
        %687 = vst [vmem:[%s309 + $0x48] sm:$0xff] %v655
        %688 = vst [vmem:[%s309 + $0x50] sm:$0xff] %v656
        %689 = vst [vmem:[%s309 + $0x58] sm:$0xff] %v657
        %690 = vst [vmem:[%s309 + $0x60] sm:$0xff] %v658
        %691 = vst [vmem:[%s309 + $0x68] sm:$0xff] %v659
        %692 = vst [vmem:[%s309 + $0x70] sm:$0xff] %v660
        %693 = vst [vmem:[%s309 + $0x78] sm:$0xff] %v661
        %694 = vst [vmem:[%s309 + $0x80] sm:$0xff] %v662
        %695 = vst [vmem:[%s309 + $0x88] sm:$0xff] %v663
        %696 = vst [vmem:[%s309 + $0x90] sm:$0xff] %v664
        %697 = vst [vmem:[%s309 + $0x98] sm:$0xff] %v665
        %698 = vst [vmem:[%s309 + $0xa0] sm:$0xff] %v666
        %699 = vst [vmem:[%s309 + $0xa8] sm:$0xff] %v667
        %700 = vst [vmem:[%s309 + $0xb0] sm:$0xff] %v668
        %701 = vst [vmem:[%s309 + $0xb8] sm:$0xff] %v669
        %702 = vst [vmem:[%s309 + $0xc0] sm:$0xff] %v670
        %703 = vst [vmem:[%s309 + $0xc8] sm:$0xff] %v671
        %704 = vst [vmem:[%s309 + $0xd0] sm:$0xff] %v672
        %705 = vst [vmem:[%s309 + $0xd8] sm:$0xff] %v673
        %706 = vst [vmem:[%s309 + $0xe0] sm:$0xff] %v674
        %707 = vst [vmem:[%s309 + $0xe8] sm:$0xff] %v675
        %708 = vst [vmem:[%s309 + $0xf0] sm:$0xff] %v676
        %709 = vst [vmem:[%s309 + $0xf8] sm:$0xff] %v677
        %v710 = vld [vmem:[#allocation7] sm:$0xff]
        %v711 = vld [vmem:[#allocation7 + $0x8] sm:$0xff]
        %v712 = vld [vmem:[#allocation7 + $0x10] sm:$0xff]
        %v713 = vld [vmem:[#allocation7 + $0x18] sm:$0xff]
        %v714 = vld [vmem:[#allocation7 + $0x20] sm:$0xff]
        %v715 = vld [vmem:[#allocation7 + $0x28] sm:$0xff]
        %v716 = vld [vmem:[#allocation7 + $0x30] sm:$0xff]
        %v717 = vld [vmem:[#allocation7 + $0x38] sm:$0xff]
        %v718 = vld [vmem:[#allocation7 + $0x40] sm:$0xff]
        %v719 = vld [vmem:[#allocation7 + $0x48] sm:$0xff]
        %v720 = vld [vmem:[#allocation7 + $0x50] sm:$0xff]
        %v721 = vld [vmem:[#allocation7 + $0x58] sm:$0xff]
        %v722 = vld [vmem:[#allocation7 + $0x60] sm:$0xff]
        %v723 = vld [vmem:[#allocation7 + $0x68] sm:$0xff]
        %v724 = vld [vmem:[#allocation7 + $0x70] sm:$0xff]
        %v725 = vld [vmem:[#allocation7 + $0x78] sm:$0xff]
        %v726 = vld [vmem:[#allocation7 + $0x80] sm:$0xff]
        %v727 = vld [vmem:[#allocation7 + $0x88] sm:$0xff]
        %v728 = vld [vmem:[#allocation7 + $0x90] sm:$0xff]
        %v729 = vld [vmem:[#allocation7 + $0x98] sm:$0xff]
        %v730 = vld [vmem:[#allocation7 + $0xa0] sm:$0xff]
        %v731 = vld [vmem:[#allocation7 + $0xa8] sm:$0xff]
        %v732 = vld [vmem:[#allocation7 + $0xb0] sm:$0xff]
        %v733 = vld [vmem:[#allocation7 + $0xb8] sm:$0xff]
        %v734 = vld [vmem:[#allocation7 + $0xc0] sm:$0xff]
        %v735 = vld [vmem:[#allocation7 + $0xc8] sm:$0xff]
        %v736 = vld [vmem:[#allocation7 + $0xd0] sm:$0xff]
        %v737 = vld [vmem:[#allocation7 + $0xd8] sm:$0xff]
        %v738 = vld [vmem:[#allocation7 + $0xe0] sm:$0xff]
        %v739 = vld [vmem:[#allocation7 + $0xe8] sm:$0xff]
        %v740 = vld [vmem:[#allocation7 + $0xf0] sm:$0xff]
        %v741 = vld [vmem:[#allocation7 + $0xf8] sm:$0xff]
        %v742 = vld [vmem:[%s4] sm:$0x3]
        %v744 = vperm.slane %v742, 0
        %v745 = vperm.slane %v742, 1
        %748 = vmatpush.msra.mxu0 %v740
        %749 = vmatpush.msra.mxu0 %v738
        %750 = vmatpush.msra.mxu0 %v736
        %751 = vmatpush.msra.mxu0 %v734
        %752 = vmatpush.msra.mxu0 %v732
        %753 = vmatpush.msra.mxu0 %v730
        %754 = vmatpush.msra.mxu0 %v728
        %755 = vmatpush.msra.mxu0 %v726
        %756 = vmatpush.msra.mxu0 %v724
        %757 = vmatpush.msra.mxu0 %v722
        %758 = vmatpush.msra.mxu0 %v720
        %759 = vmatpush.msra.mxu0 %v718
        %760 = vmatpush.msra.mxu0 %v716
        %761 = vmatpush.msra.mxu0 %v714
        %762 = vmatpush.msra.mxu0 %v712
        %763 = vmatpush.msra.mxu0 %v710
        %764 = vmatmul.f32.gmra.mxu0 %v646
        %v765 = vpop.f32.mrf.mxu0
        %v766 = vadd.f32 %v744, %v765
        %767 = vmatmul.f32.gmra.mxu0 %v647
        %v768 = vpop.f32.mrf.mxu0
        %v769 = vadd.f32 %v744, %v768
        %770 = vmatmul.f32.gmra.mxu0 %v648
        %v771 = vpop.f32.mrf.mxu0
        %v772 = vadd.f32 %v744, %v771
        %773 = vmatmul.f32.gmra.mxu0 %v649
        %v774 = vpop.f32.mrf.mxu0
        %v775 = vadd.f32 %v744, %v774
        %776 = vmatmul.f32.gmra.mxu0 %v650
        %v777 = vpop.f32.mrf.mxu0
        %v778 = vadd.f32 %v744, %v777
        %779 = vmatmul.f32.gmra.mxu0 %v651
        %v780 = vpop.f32.mrf.mxu0
        %v781 = vadd.f32 %v744, %v780
        %782 = vmatmul.f32.gmra.mxu0 %v652
        %v783 = vpop.f32.mrf.mxu0
        %v784 = vadd.f32 %v744, %v783
        %785 = vmatmul.f32.gmra.mxu0 %v653
        %v786 = vpop.f32.mrf.mxu0
        %v787 = vadd.f32 %v744, %v786
        %788 = vmatmul.f32.gmra.mxu0 %v654
        %v789 = vpop.f32.mrf.mxu0
        %v790 = vadd.f32 %v744, %v789
        %791 = vmatmul.f32.gmra.mxu0 %v655
        %v792 = vpop.f32.mrf.mxu0
        %v793 = vadd.f32 %v744, %v792
        %794 = vmatmul.f32.gmra.mxu0 %v656
        %v795 = vpop.f32.mrf.mxu0
        %v796 = vadd.f32 %v744, %v795
        %797 = vmatmul.f32.gmra.mxu0 %v657
        %v798 = vpop.f32.mrf.mxu0
        %v799 = vadd.f32 %v744, %v798
        %800 = vmatmul.f32.gmra.mxu0 %v658
        %v801 = vpop.f32.mrf.mxu0
        %v802 = vadd.f32 %v744, %v801
        %803 = vmatmul.f32.gmra.mxu0 %v659
        %v804 = vpop.f32.mrf.mxu0
        %v805 = vadd.f32 %v744, %v804
        %806 = vmatmul.f32.gmra.mxu0 %v660
        %v807 = vpop.f32.mrf.mxu0
        %v808 = vadd.f32 %v744, %v807
        %809 = vmatmul.f32.gmra.mxu0 %v661
        %v810 = vpop.f32.mrf.mxu0
        %v811 = vadd.f32 %v744, %v810
        %812 = vmatmul.f32.gmra.mxu0 %v662
        %v813 = vpop.f32.mrf.mxu0
        %v814 = vadd.f32 %v744, %v813
        %815 = vmatmul.f32.gmra.mxu0 %v663
        %v816 = vpop.f32.mrf.mxu0
        %v817 = vadd.f32 %v744, %v816
        %818 = vmatmul.f32.gmra.mxu0 %v664
        %v819 = vpop.f32.mrf.mxu0
        %v820 = vadd.f32 %v744, %v819
        %821 = vmatmul.f32.gmra.mxu0 %v665
        %v822 = vpop.f32.mrf.mxu0
        %v823 = vadd.f32 %v744, %v822
        %824 = vmatmul.f32.gmra.mxu0 %v666
        %v825 = vpop.f32.mrf.mxu0
        %v826 = vadd.f32 %v744, %v825
        %827 = vmatmul.f32.gmra.mxu0 %v667
        %v828 = vpop.f32.mrf.mxu0
        %v829 = vadd.f32 %v744, %v828
        %830 = vmatmul.f32.gmra.mxu0 %v668
        %v831 = vpop.f32.mrf.mxu0
        %v832 = vadd.f32 %v744, %v831
        %833 = vmatmul.f32.gmra.mxu0 %v669
        %v834 = vpop.f32.mrf.mxu0
        %v835 = vadd.f32 %v744, %v834
        %836 = vmatmul.f32.gmra.mxu0 %v670
        %v837 = vpop.f32.mrf.mxu0
        %v838 = vadd.f32 %v744, %v837
        %839 = vmatmul.f32.gmra.mxu0 %v671
        %v840 = vpop.f32.mrf.mxu0
        %v841 = vadd.f32 %v744, %v840
        %842 = vmatmul.f32.gmra.mxu0 %v672
        %v843 = vpop.f32.mrf.mxu0
        %v844 = vadd.f32 %v744, %v843
        %845 = vmatmul.f32.gmra.mxu0 %v673
        %v846 = vpop.f32.mrf.mxu0
        %v847 = vadd.f32 %v744, %v846
        %848 = vmatmul.f32.gmra.mxu0 %v674
        %v849 = vpop.f32.mrf.mxu0
        %v850 = vadd.f32 %v744, %v849
        %851 = vmatmul.f32.gmra.mxu0 %v675
        %v852 = vpop.f32.mrf.mxu0
        %v853 = vadd.f32 %v744, %v852
        %854 = vmatmul.f32.gmra.mxu0 %v676
        %v855 = vpop.f32.mrf.mxu0
        %v856 = vadd.f32 %v744, %v855
        %857 = vmatmul.f32.gmra.mxu0 %v677
        %v858 = vpop.f32.mrf.mxu0
        %v859 = vadd.f32 %v744, %v858
        %860 = vdwg.mxu0
        %861 = vmatpush.msra.mxu0 %v741
        %862 = vmatpush.msra.mxu0 %v739
        %863 = vmatpush.msra.mxu0 %v737
        %864 = vmatpush.msra.mxu0 %v735
        %865 = vmatpush.msra.mxu0 %v733
        %866 = vmatpush.msra.mxu0 %v731
        %867 = vmatpush.msra.mxu0 %v729
        %868 = vmatpush.msra.mxu0 %v727
        %869 = vmatpush.msra.mxu0 %v725
        %870 = vmatpush.msra.mxu0 %v723
        %871 = vmatpush.msra.mxu0 %v721
        %872 = vmatpush.msra.mxu0 %v719
        %873 = vmatpush.msra.mxu0 %v717
        %874 = vmatpush.msra.mxu0 %v715
        %875 = vmatpush.msra.mxu0 %v713
        %876 = vmatpush.msra.mxu0 %v711
        %877 = vmatmul.f32.gmra.mxu0 %v646
        %v878 = vpop.f32.mrf.mxu0
        %v879 = vadd.f32 %v745, %v878
        %880 = vmatmul.f32.gmra.mxu0 %v647
        %v881 = vpop.f32.mrf.mxu0
        %v882 = vadd.f32 %v745, %v881
        %883 = vmatmul.f32.gmra.mxu0 %v648
        %v884 = vpop.f32.mrf.mxu0
        %v885 = vadd.f32 %v745, %v884
        %886 = vmatmul.f32.gmra.mxu0 %v649
        %v887 = vpop.f32.mrf.mxu0
        %v888 = vadd.f32 %v745, %v887
        %889 = vmatmul.f32.gmra.mxu0 %v650
        %v890 = vpop.f32.mrf.mxu0
        %v891 = vadd.f32 %v745, %v890
        %892 = vmatmul.f32.gmra.mxu0 %v651
        %v893 = vpop.f32.mrf.mxu0
        %v894 = vadd.f32 %v745, %v893
        %895 = vmatmul.f32.gmra.mxu0 %v652
        %v896 = vpop.f32.mrf.mxu0
        %v897 = vadd.f32 %v745, %v896
        %898 = vmatmul.f32.gmra.mxu0 %v653
        %v899 = vpop.f32.mrf.mxu0
        %v900 = vadd.f32 %v745, %v899
        %901 = vmatmul.f32.gmra.mxu0 %v654
        %v902 = vpop.f32.mrf.mxu0
        %v903 = vadd.f32 %v745, %v902
        %904 = vmatmul.f32.gmra.mxu0 %v655
        %v905 = vpop.f32.mrf.mxu0
        %v906 = vadd.f32 %v745, %v905
        %907 = vmatmul.f32.gmra.mxu0 %v656
        %v908 = vpop.f32.mrf.mxu0
        %v909 = vadd.f32 %v745, %v908
        %910 = vmatmul.f32.gmra.mxu0 %v657
        %v911 = vpop.f32.mrf.mxu0
        %v912 = vadd.f32 %v745, %v911
        %913 = vmatmul.f32.gmra.mxu0 %v658
        %v914 = vpop.f32.mrf.mxu0
        %v915 = vadd.f32 %v745, %v914
        %916 = vmatmul.f32.gmra.mxu0 %v659
        %v917 = vpop.f32.mrf.mxu0
        %v918 = vadd.f32 %v745, %v917
        %919 = vmatmul.f32.gmra.mxu0 %v660
        %v920 = vpop.f32.mrf.mxu0
        %v921 = vadd.f32 %v745, %v920
        %922 = vmatmul.f32.gmra.mxu0 %v661
        %v923 = vpop.f32.mrf.mxu0
        %v924 = vadd.f32 %v745, %v923
        %925 = vmatmul.f32.gmra.mxu0 %v662
        %v926 = vpop.f32.mrf.mxu0
        %v927 = vadd.f32 %v745, %v926
        %928 = vmatmul.f32.gmra.mxu0 %v663
        %v929 = vpop.f32.mrf.mxu0
        %v930 = vadd.f32 %v745, %v929
        %931 = vmatmul.f32.gmra.mxu0 %v664
        %v932 = vpop.f32.mrf.mxu0
        %v933 = vadd.f32 %v745, %v932
        %934 = vmatmul.f32.gmra.mxu0 %v665
        %v935 = vpop.f32.mrf.mxu0
        %v936 = vadd.f32 %v745, %v935
        %937 = vmatmul.f32.gmra.mxu0 %v666
        %v938 = vpop.f32.mrf.mxu0
        %v939 = vadd.f32 %v745, %v938
        %940 = vmatmul.f32.gmra.mxu0 %v667
        %v941 = vpop.f32.mrf.mxu0
        %v942 = vadd.f32 %v745, %v941
        %943 = vmatmul.f32.gmra.mxu0 %v668
        %v944 = vpop.f32.mrf.mxu0
        %v945 = vadd.f32 %v745, %v944
        %946 = vmatmul.f32.gmra.mxu0 %v669
        %v947 = vpop.f32.mrf.mxu0
        %v948 = vadd.f32 %v745, %v947
        %949 = vmatmul.f32.gmra.mxu0 %v670
        %v950 = vpop.f32.mrf.mxu0
        %v951 = vadd.f32 %v745, %v950
        %952 = vmatmul.f32.gmra.mxu0 %v671
        %v953 = vpop.f32.mrf.mxu0
        %v954 = vadd.f32 %v745, %v953
        %955 = vmatmul.f32.gmra.mxu0 %v672
        %v956 = vpop.f32.mrf.mxu0
        %v957 = vadd.f32 %v745, %v956
        %958 = vmatmul.f32.gmra.mxu0 %v673
        %v959 = vpop.f32.mrf.mxu0
        %v960 = vadd.f32 %v745, %v959
        %961 = vmatmul.f32.gmra.mxu0 %v674
        %v962 = vpop.f32.mrf.mxu0
        %v963 = vadd.f32 %v745, %v962
        %964 = vmatmul.f32.gmra.mxu0 %v675
        %v965 = vpop.f32.mrf.mxu0
        %v966 = vadd.f32 %v745, %v965
        %967 = vmatmul.f32.gmra.mxu0 %v676
        %v968 = vpop.f32.mrf.mxu0
        %v969 = vadd.f32 %v745, %v968
        %970 = vmatmul.f32.gmra.mxu0 %v677
        %v971 = vpop.f32.mrf.mxu0
        %v972 = vadd.f32 %v745, %v971
        %973 = vdwg.mxu0
        %974 = vst [vmem:[%s316] sm:$0xff] %v766
        %975 = vst [vmem:[%s316 + $0x8] sm:$0xff] %v879
        %976 = vst [vmem:[%s316 + $0x10] sm:$0xff] %v769
        %977 = vst [vmem:[%s316 + $0x18] sm:$0xff] %v882
        %978 = vst [vmem:[%s316 + $0x20] sm:$0xff] %v772
        %979 = vst [vmem:[%s316 + $0x28] sm:$0xff] %v885
        %980 = vst [vmem:[%s316 + $0x30] sm:$0xff] %v775
        %981 = vst [vmem:[%s316 + $0x38] sm:$0xff] %v888
        %982 = vst [vmem:[%s316 + $0x40] sm:$0xff] %v778
        %983 = vst [vmem:[%s316 + $0x48] sm:$0xff] %v891
        %984 = vst [vmem:[%s316 + $0x50] sm:$0xff] %v781
        %985 = vst [vmem:[%s316 + $0x58] sm:$0xff] %v894
        %986 = vst [vmem:[%s316 + $0x60] sm:$0xff] %v784
        %987 = vst [vmem:[%s316 + $0x68] sm:$0xff] %v897
        %988 = vst [vmem:[%s316 + $0x70] sm:$0xff] %v787
        %989 = vst [vmem:[%s316 + $0x78] sm:$0xff] %v900
        %990 = vst [vmem:[%s316 + $0x80] sm:$0xff] %v790
        %991 = vst [vmem:[%s316 + $0x88] sm:$0xff] %v903
        %992 = vst [vmem:[%s316 + $0x90] sm:$0xff] %v793
        %993 = vst [vmem:[%s316 + $0x98] sm:$0xff] %v906
        %994 = vst [vmem:[%s316 + $0xa0] sm:$0xff] %v796
        %995 = vst [vmem:[%s316 + $0xa8] sm:$0xff] %v909
        %996 = vst [vmem:[%s316 + $0xb0] sm:$0xff] %v799
        %997 = vst [vmem:[%s316 + $0xb8] sm:$0xff] %v912
        %998 = vst [vmem:[%s316 + $0xc0] sm:$0xff] %v802
        %999 = vst [vmem:[%s316 + $0xc8] sm:$0xff] %v915
        %1000 = vst [vmem:[%s316 + $0xd0] sm:$0xff] %v805
        %1001 = vst [vmem:[%s316 + $0xd8] sm:$0xff] %v918
        %1002 = vst [vmem:[%s316 + $0xe0] sm:$0xff] %v808
        %1003 = vst [vmem:[%s316 + $0xe8] sm:$0xff] %v921
        %1004 = vst [vmem:[%s316 + $0xf0] sm:$0xff] %v811
        %1005 = vst [vmem:[%s316 + $0xf8] sm:$0xff] %v924
        %1006 = vst [vmem:[%s316 + $0x100] sm:$0xff] %v814
        %1007 = vst [vmem:[%s316 + $0x108] sm:$0xff] %v927
        %1008 = vst [vmem:[%s316 + $0x110] sm:$0xff] %v817
        %1009 = vst [vmem:[%s316 + $0x118] sm:$0xff] %v930
        %1010 = vst [vmem:[%s316 + $0x120] sm:$0xff] %v820
        %1011 = vst [vmem:[%s316 + $0x128] sm:$0xff] %v933
        %1012 = vst [vmem:[%s316 + $0x130] sm:$0xff] %v823
        %1013 = vst [vmem:[%s316 + $0x138] sm:$0xff] %v936
        %1014 = vst [vmem:[%s316 + $0x140] sm:$0xff] %v826
        %1015 = vst [vmem:[%s316 + $0x148] sm:$0xff] %v939
        %1016 = vst [vmem:[%s316 + $0x150] sm:$0xff] %v829
        %1017 = vst [vmem:[%s316 + $0x158] sm:$0xff] %v942
        %1018 = vst [vmem:[%s316 + $0x160] sm:$0xff] %v832
        %1019 = vst [vmem:[%s316 + $0x168] sm:$0xff] %v945
        %1020 = vst [vmem:[%s316 + $0x170] sm:$0xff] %v835
        %1021 = vst [vmem:[%s316 + $0x178] sm:$0xff] %v948
        %1022 = vst [vmem:[%s316 + $0x180] sm:$0xff] %v838
        %1023 = vst [vmem:[%s316 + $0x188] sm:$0xff] %v951
        %1024 = vst [vmem:[%s316 + $0x190] sm:$0xff] %v841
        %1025 = vst [vmem:[%s316 + $0x198] sm:$0xff] %v954
        %1026 = vst [vmem:[%s316 + $0x1a0] sm:$0xff] %v844
        %1027 = vst [vmem:[%s316 + $0x1a8] sm:$0xff] %v957
        %1028 = vst [vmem:[%s316 + $0x1b0] sm:$0xff] %v847
        %1029 = vst [vmem:[%s316 + $0x1b8] sm:$0xff] %v960
        %1030 = vst [vmem:[%s316 + $0x1c0] sm:$0xff] %v850
        %1031 = vst [vmem:[%s316 + $0x1c8] sm:$0xff] %v963
        %1032 = vst [vmem:[%s316 + $0x1d0] sm:$0xff] %v853
        %1033 = vst [vmem:[%s316 + $0x1d8] sm:$0xff] %v966
        %1034 = vst [vmem:[%s316 + $0x1e0] sm:$0xff] %v856
        %1035 = vst [vmem:[%s316 + $0x1e8] sm:$0xff] %v969
        %1036 = vst [vmem:[%s316 + $0x1f0] sm:$0xff] %v859
        %1037 = vst [vmem:[%s316 + $0x1f8] sm:$0xff] %v972
        %s1038 = sand.u32 %s146, 1
        %s1039 = scalar_lea.sflag [#allocation4], %s1038
        %s1040 = sand.u32 %s146, 1
        %s1041 = smul.addr %s1040, 256
        %s1042 = scalar_lea.vmem [#allocation8], %s1041
        %s1043 = sand.u32 %s172, 1
        %s1044 = scalar_lea.sflag [#allocation10], %s1043
        %s1045 = sand.u32 %s172, 1
        %s1046 = smul.addr %s1045, 512
        %s1047 = scalar_lea.vmem [#allocation9], %s1046
        // Predicated region
        $region53: #{_lambda_.1} parent=39 // pred_check
          %p1048 = pneg %p156
        $region54: #{_lambda_.1} parent=39 // pred_check_branch
          %1050 = sbr.rel (%p1048) target = $region56
        $region55: #{_lambda_.1} parent=39 // pred_region
          %s1051 = smul.u32 32, %s28
          %1053 = vsyncadd %s1039, 0
          %s1054 = smul.addr %s1051, 8
          %s1055 = scalar_lea.hbm %s5, %s1054
          %s1056 = sshll.u32 %s1042, 4
          %s1057 = int_to_ptr.vmem [resolvable:$true] %s1056
          %s1058 = sshll.u32 %s1055, 4
          %s1059 = int_to_ptr.hbm [resolvable:$true] %s1058
          %1064 = dma.vmem_to_hbm [thread:$0]  %s1057, 4096, %s1059, %s1039, 128, 128, 8
        $region56: #{_lambda_.1} parent=39 // pred_fallthru
          _
        // Predicated region
        $region57: #{_lambda_.1} parent=39 // pred_check
          %p1065 = pneg %p182
        $region58: #{_lambda_.1} parent=39 // pred_check_branch
          %1067 = sbr.rel (%p1065) target = $region60
        $region59: #{_lambda_.1} parent=39 // pred_region
          %s1068 = smul.u32 32, %s28
          %1070 = vsyncadd %s1044, 0
          %s1071 = smul.addr %s1068, 2
          %s1072 = smul.addr %s1071, 8
          %s1073 = scalar_lea.hbm %s6, %s1072
          %s1074 = sshll.u32 %s1047, 4
          %s1075 = int_to_ptr.vmem [resolvable:$true] %s1074
          %s1076 = sshll.u32 %s1073, 4
          %s1077 = int_to_ptr.hbm [resolvable:$true] %s1076
          %1082 = dma.vmem_to_hbm [thread:$0]  %s1075, 8192, %s1077, %s1044, 256, 256, 16
        $region60: #{_lambda_.1} parent=39 // pred_fallthru
          _
      $region40: #{_lambda_.1} parent=5 // pred_fallthru
        _
      %p1083 = scmp.le.s32.totalorder 2, %s23
      // Predicated region
      $region61: #{_lambda_.1} parent=5 // pred_check
        %p1084 = pneg %p1083
      $region62: #{_lambda_.1} parent=5 // pred_check_branch
        %1086 = sbr.rel (%p1084) target = $region64
      $region63: #{_lambda_.1} parent=5 // pred_region
        %s1087 = ssub.s32 %s23, 2
        // Predicated region
        $region65: #{_lambda_.1} parent=63 // pred_check
          %p1088 = pneg %p162
        $region66: #{_lambda_.1} parent=63 // pred_check_branch
          %1090 = sbr.rel (%p1088) target = $region68
        $region67: #{_lambda_.1} parent=63 // pred_region
          %s1091 = sand.u32 %s147, 1
          %s1092 = scalar_lea.sflag [#allocation4], %s1091
          %s1093 = sand.u32 %s147, 1
          %s1094 = smul.addr %s1093, 256
          %s1095 = scalar_lea.vmem [#allocation8], %s1094
          %1097 = dma.done %s1092, 4096
        $region68: #{_lambda_.1} parent=63 // pred_fallthru
          _
        // Predicated region
        $region69: #{_lambda_.1} parent=63 // pred_check
          %p1098 = pneg %p188
        $region70: #{_lambda_.1} parent=63 // pred_check_branch
          %1100 = sbr.rel (%p1098) target = $region72
        $region71: #{_lambda_.1} parent=63 // pred_region
          %s1101 = sand.u32 %s173, 1
          %s1102 = scalar_lea.sflag [#allocation10], %s1101
          %s1103 = sand.u32 %s173, 1
          %s1104 = smul.addr %s1103, 512
          %s1105 = scalar_lea.vmem [#allocation9], %s1104
          %1107 = dma.done %s1102, 8192
        $region72: #{_lambda_.1} parent=63 // pred_fallthru
          _
      $region64: #{_lambda_.1} parent=5 // pred_fallthru
        _
    $region6: #{_lambda_.1} parent=1 // loop_footer
      %s27 = sadd.s32 1, %s23
    $region7: #{_lambda_.1} parent=1 // loop_footer_branch
      %22 = sbr.rel target = $region3
    $region8: #{_lambda_.1} parent=1 // loop_exit
      _
    %1108 = vsyncpa [#allocation3], 1
    %s1109 = scalar_lea.sflag [#allocation3], 1
    %1110 = vsyncpa %s1109, 1
    %1111 = vsyncpa [#allocation6], 1
    %1112 = vsyncpa [#allocation4], 1
    %s1113 = scalar_lea.sflag [#allocation4], 1
    %1114 = vsyncpa %s1113, 1
    %1115 = vsyncpa [#allocation10], 1
    %s1116 = scalar_lea.sflag [#allocation10], 1
    %1117 = vsyncpa %s1116, 1

</llo_original>
